<compile_context>
chip_gen: v7x
topology: tpu7x:2x2x1
jax: 0.10.0
libtpu: 0.0.40
codegen_flags: <defaults>
</compile_context>

<pallas_src>
import functools

import jax
import jax.numpy as jnp
from jax import lax
from jax.experimental import pallas as pl
from jax.experimental.pallas import tpu as pltpu


# -----------------------------------------------------------------------------
# helpers
# -----------------------------------------------------------------------------
def _pick_tile(dim, desired, multiple):
    """Largest tile <= desired that is a multiple of `multiple` and divides dim."""
    assert dim % multiple == 0, f"dim {dim} must be a multiple of {multiple}"
    t = max(multiple, min(desired, dim))
    t = (t // multiple) * multiple
    while dim % t != 0:
        t -= multiple
    return t


# -----------------------------------------------------------------------------
# Kernel A:  ln = LayerNorm(GELU(x @ W1 + b1))        (token-tiled, bf16 in/out)
# -----------------------------------------------------------------------------
def _dense_gelu_ln_kernel(x_ref, w1_ref, b1_ref, gamma_ref, beta_ref, ln_ref):
    # Linear(768, 768): bf16 x bf16 -> f32 accumulate on the MXU
    h = jnp.dot(x_ref[...], w1_ref[...], preferred_element_type=jnp.float32)
    h = h + b1_ref[...]

    # nn.GELU() default = exact (erf-based) GELU, f32 elementwise
    g = 0.5 * h * (1.0 + lax.erf(h * 0.7071067811865476))

    # nn.LayerNorm(768, eps=1e-5), f32
    mu = jnp.mean(g, axis=-1, keepdims=True)
    var = jnp.mean((g - mu) * (g - mu), axis=-1, keepdims=True)
    ln = (g - mu) * lax.rsqrt(var + 1e-5)
    ln = ln * gamma_ref[...] + beta_ref[...]

    ln_ref[...] = ln.astype(ln_ref.dtype)        # store bf16


def dense_gelu_ln(x_bf16, w1_bf16, b1, gamma, beta, *, token_tile=512):
    N, H = x_bf16.shape
    T = _pick_tile(N, token_tile, 8)
    return pl.pallas_call(
        _dense_gelu_ln_kernel,
        out_shape=jax.ShapeDtypeStruct((N, H), jnp.bfloat16),
        grid_spec=pltpu.PrefetchScalarGridSpec(
            num_scalar_prefetch=0,
            grid=(N // T,),
            in_specs=[
                pl.BlockSpec((T, H), lambda i: (i, 0)),   # x tile (bf16)
                pl.BlockSpec((H, H), lambda i: (0, 0)),   # W1 (bf16, resident)
                pl.BlockSpec((1, H), lambda i: (0, 0)),   # b1
                pl.BlockSpec((1, H), lambda i: (0, 0)),   # gamma
                pl.BlockSpec((1, H), lambda i: (0, 0)),   # beta
            ],
            out_specs=pl.BlockSpec((T, H), lambda i: (i, 0)),
        ),
        compiler_params=pltpu.CompilerParams(
            dimension_semantics=("parallel",)),
    )(x_bf16, w1_bf16, b1, gamma, beta)


# -----------------------------------------------------------------------------
# Kernel B:  vocab-tiled decoder matmul + fused online-softmax cross-entropy
#
# grid = (V//tv, N//T)  -- vocab OUTER (each Wd tile DMA'd once, reused over
# all token tiles), token INNER and "parallel" (v7x megacore split).
# Per-token running (max, sumexp, picked-logit) accumulators live in VMEM
# scratch indexed by the token-tile id; the per-token NLL output block is
# finalized under @pl.when(j == last).
# -----------------------------------------------------------------------------
def _decoder_ce_kernel(labels_ref, ln_ref, wd_ref, bd_ref,
                       logits_ref, nll_ref,
                       m_acc, l_acc, p_acc):
    j = pl.program_id(0)           # vocab tile (outer, reduction for CE)
    i = pl.program_id(1)           # token tile (inner, parallel)
    nj = pl.num_programs(0)
    tv = logits_ref.shape[-1]

    @pl.when(j == 0)
    def _init():
        m_acc[i] = jnp.full(m_acc.shape[1:], -1e30, jnp.float32)
        l_acc[i] = jnp.zeros(l_acc.shape[1:], jnp.float32)
        p_acc[i] = jnp.zeros(p_acc.shape[1:], jnp.float32)

    # decoder Linear(768, vocab) tile: bf16 x bf16 -> f32 (MXU)
    logits = jnp.dot(ln_ref[...], wd_ref[...],
                     preferred_element_type=jnp.float32) + bd_ref[...]
    logits_ref[...] = logits                                    # written once

    # ---- fused cross-entropy: online logsumexp + label pick ----
    labels = labels_ref[...]                                    # (T, 1) int32
    col = j * tv + lax.broadcasted_iota(jnp.int32, logits.shape, 1)
    m_old = m_acc[i]
    m_new = jnp.maximum(m_old, jnp.max(logits, axis=-1, keepdims=True))
    alpha = jnp.exp(m_old - m_new)
    l_acc[i] = alpha * l_acc[i] + jnp.sum(jnp.exp(logits - m_new),
                                          axis=-1, keepdims=True)
    p_acc[i] = p_acc[i] + jnp.sum(jnp.where(col == labels, logits, 0.0),
                                  axis=-1, keepdims=True)
    m_acc[i] = m_new

    @pl.when(j == nj - 1)
    def _finalize():
        nll = m_acc[i] + jnp.log(l_acc[i]) - p_acc[i]           # (T, 1)
        valid = labels_ref[...] >= 0                            # ignore_index=-100
        nll_ref[...] = jnp.where(valid, nll, 0.0)


def decoder_with_ce(ln_bf16, wd_bf16, bd, shifted_labels,
                    *, token_tile=256, vocab_tile=2048):
    N, H = ln_bf16.shape
    V = wd_bf16.shape[1]

    # Pad vocab to a multiple of 128 (lane-dense output stores, full MXU tiles).
    # Padded columns get bias -1e30 so they vanish from the softmax and can
    # never match a label.
    Vp = ((V + 127) // 128) * 128
    if Vp != V:
        wd_bf16 = jnp.pad(wd_bf16, ((0, 0), (0, Vp - V)))
        bd = jnp.pad(bd, ((0, 0), (0, Vp - V)), constant_values=-1e30)

    T = _pick_tile(N, token_tile, 8)
    tv = _pick_tile(Vp, vocab_tile, 128)
    n_tok = N // T
    n_voc = Vp // tv

    logits, nll = pl.pallas_call(
        _decoder_ce_kernel,
        out_shape=(jax.ShapeDtypeStruct((N, Vp), jnp.float32),
                   jax.ShapeDtypeStruct((N, 1), jnp.float32)),
        grid_spec=pltpu.PrefetchScalarGridSpec(
            num_scalar_prefetch=0,
            grid=(n_voc, n_tok),
            in_specs=[
                pl.BlockSpec((T, 1), lambda j, i: (i, 0)),    # shifted labels
                pl.BlockSpec((T, H), lambda j, i: (i, 0)),    # ln (bf16)
                pl.BlockSpec((H, tv), lambda j, i: (0, j)),   # Wd tile (bf16)
                pl.BlockSpec((1, tv), lambda j, i: (0, j)),   # bd tile
            ],
            out_specs=[
                pl.BlockSpec((T, tv), lambda j, i: (i, j)),   # logits tile
                pl.BlockSpec((T, 1), lambda j, i: (i, 0)),    # masked per-token NLL
            ],
            scratch_shapes=[pltpu.VMEM((n_tok, T, 1), jnp.float32)] * 3,
        ),
        compiler_params=pltpu.CompilerParams(
            dimension_semantics=("arbitrary", "parallel"),
            vmem_limit_bytes=48 * 1024 * 1024),
    )(shifted_labels, ln_bf16, wd_bf16, bd)

    if Vp != V:
        logits = logits[:, :V]     # drop padded columns
    return logits, nll


# -----------------------------------------------------------------------------
# Model wrapper (mirrors Model.forward)
# -----------------------------------------------------------------------------
def init_params(key, hidden, vocab):
    k1, k2, k3 = jax.random.split(key, 3)
    scale = 0.02
    return dict(
        emb=jax.random.normal(k1, (vocab, hidden), jnp.float32) * scale,
        w1=jax.random.normal(k2, (hidden, hidden), jnp.float32) * scale,
        b1=jnp.zeros((1, hidden), jnp.float32),
        gamma=jnp.ones((1, hidden), jnp.float32),
        beta=jnp.zeros((1, hidden), jnp.float32),
        wd=jax.random.normal(k3, (hidden, vocab), jnp.float32) * scale,
        bd=jnp.zeros((1, vocab), jnp.float32),   # decoder.bias = zeros(vocab)
    )


@functools.partial(jax.jit, static_argnames=("token_tile", "vocab_tile"))
def model_forward(params, input_ids, attention_mask, labels,
                  *, token_tile=256, vocab_tile=2048):
    B, S = input_ids.shape
    H = params["emb"].shape[1]
    V = params["wd"].shape[1]

    # TODO(synk): the distilroberta-base transformer backbone is not
    # re-implemented; a deterministic embedding lookup + attention-mask gate
    # stands in for `self.pretrained(...).last_hidden_state`.
    hidden = params["emb"][input_ids] * attention_mask[..., None].astype(jnp.float32)
    x = hidden.reshape(B * S, H).astype(jnp.bfloat16)            # [N, H] bf16

    ln = dense_gelu_ln(x, params["w1"].astype(jnp.bfloat16), params["b1"],
                       params["gamma"], params["beta"], token_tile=token_tile)

    # Pre-shift the (tiny) labels instead of slicing the huge logits tensor:
    # target for token n is labels[n+1] within the sequence, -100 (ignored)
    # for the last position — equivalent to logits[:, :-1] vs labels[:, 1:].
    shifted = jnp.concatenate(
        [labels[:, 1:], jnp.full((B, 1), -100, labels.dtype)], axis=1)
    shifted = shifted.reshape(B * S, 1).astype(jnp.int32)

    logits_flat, nll = decoder_with_ce(
        ln, params["wd"].astype(jnp.bfloat16), params["bd"], shifted,
        token_tile=token_tile, vocab_tile=vocab_tile)

    # mean over valid (non -100) targets, like nn.CrossEntropyLoss default.
    n_valid = jnp.sum((shifted >= 0).astype(jnp.float32))
    loss = jnp.sum(nll) / n_valid

    return {"logits": logits_flat.reshape(B, S, V), "loss": loss}


if __name__ == "__main__":
    # small stand-in shapes (real model: H=768, V≈50265)
    B, S, H, V = 2, 8, 128, 512

    key = jax.random.PRNGKey(0)
    kp, ki, kl = jax.random.split(key, 3)

    params = init_params(kp, H, V)
    input_ids = jax.random.randint(ki, (B, S), 0, V, dtype=jnp.int32)
    attention_mask = jnp.ones((B, S), dtype=jnp.int32)
    labels = jax.random.randint(kl, (B, S), 0, V, dtype=jnp.int32)
    labels = labels.at[0, 3].set(-100)        # exercise ignore_index=-100

    # small tiles so the demo exercises multi-tile token AND vocab grids
    out = model_forward(params, input_ids, attention_mask, labels,
                        token_tile=8, vocab_tile=128)
    jax.block_until_ready(out)

    # ---- pure-JAX reference with matching bf16 rounding of weights/acts ----
    f32 = jnp.float32
    x = (params["emb"][input_ids] * attention_mask[..., None].astype(f32)
         ).reshape(B * S, H)
    xb = x.astype(jnp.bfloat16).astype(f32)
    w1b = params["w1"].astype(jnp.bfloat16).astype(f32)
    wdb = params["wd"].astype(jnp.bfloat16).astype(f32)
    h = xb @ w1b + params["b1"]
    g = 0.5 * h * (1.0 + lax.erf(h / jnp.sqrt(2.0)))
    mu = g.mean(-1, keepdims=True)
    var = ((g - mu) ** 2).mean(-1, keepdims=True)
    ln_ref = (g - mu) * lax.rsqrt(var + 1e-5) * params["gamma"] + params["beta"]
    lnb = ln_ref.astype(jnp.bfloat16).astype(f32)
    logits_ref = (lnb @ wdb + params["bd"]).reshape(B, S, V)

    sl = logits_ref[:, :-1].reshape(-1, V)
    tl = labels[:, 1:].reshape(-1)
    valid = tl >= 0
    lse = jax.nn.logsumexp(sl, axis=-1)
    picked = sl[jnp.arange(sl.shape[0]), jnp.where(valid, tl, 0)]
    loss_ref = jnp.sum(jnp.where(valid, lse - picked, 0.0)) / jnp.sum(valid)

    assert jnp.allclose(out["logits"], logits_ref, atol=5e-3, rtol=5e-3), (
        float(jnp.max(jnp.abs(out["logits"] - logits_ref))))
    assert jnp.allclose(out["loss"], loss_ref, atol=5e-3, rtol=5e-3), (
        float(out["loss"]), float(loss_ref))

    print("KERNEL_OK")
</pallas_src>

<mosaic_0001>
module attributes {stable_mosaic.version = 11 : i64} {
  func.func @_dense_gelu_ln_kernel(%arg0: i32, %arg1: memref<8x128xbf16, #tpu.memory_space<vmem>>, %arg2: memref<128x128xbf16, #tpu.memory_space<vmem>>, %arg3: memref<1x128xf32, #tpu.memory_space<vmem>>, %arg4: memref<1x128xf32, #tpu.memory_space<vmem>>, %arg5: memref<1x128xf32, #tpu.memory_space<vmem>>, %arg6: memref<8x128xbf16, #tpu.memory_space<vmem>>) attributes {dimension_semantics = [#tpu.dimension_semantics<parallel>], iteration_bounds = array<i64: 2>, scalar_prefetch = 0 : i64, scratch_operands = 0 : i64, tpu.core_type = #tpu.core_type<tc>, window_params = [{transform_indices = @transform_0, window_bounds = array<i64: 8, 128>}, {pipeline_mode = #tpu.pipeline_mode<synchronous>, transform_indices = @transform_1, window_bounds = array<i64: 128, 128>}, {pipeline_mode = #tpu.pipeline_mode<synchronous>, transform_indices = @transform_2, window_bounds = array<i64: 1, 128>}, {pipeline_mode = #tpu.pipeline_mode<synchronous>, transform_indices = @transform_3, window_bounds = array<i64: 1, 128>}, {pipeline_mode = #tpu.pipeline_mode<synchronous>, transform_indices = @transform_4, window_bounds = array<i64: 1, 128>}, {transform_indices = @transform_5, window_bounds = array<i64: 8, 128>}]} {
    %c0 = arith.constant 0 : index
    %c0_0 = arith.constant 0 : index
    %0 = vector.load %arg1[%c0, %c0_0] : memref<8x128xbf16, #tpu.memory_space<vmem>>, vector<8x128xbf16>
    %c0_1 = arith.constant 0 : index
    %c0_2 = arith.constant 0 : index
    %1 = vector.load %arg2[%c0_1, %c0_2] : memref<128x128xbf16, #tpu.memory_space<vmem>>, vector<128x128xbf16>
    %cst = arith.constant dense<0.000000e+00> : vector<8x128xf32>
    %2 = tpu.matmul %0, %1, %cst {dimension_numbers = #tpu.dot_dimension_numbers<[1], [0], [0], [1], [0, 0, 1, 1], [], []>} : vector<8x128xbf16>, vector<128x128xbf16>, vector<8x128xf32> -> vector<8x128xf32>
    %c0_3 = arith.constant 0 : index
    %c0_4 = arith.constant 0 : index
    %3 = vector.load %arg3[%c0_3, %c0_4] : memref<1x128xf32, #tpu.memory_space<vmem>>, vector<1x128xf32>
    %4 = vector.broadcast %3 : vector<1x128xf32> to vector<8x128xf32>
    %5 = arith.addf %2, %4 : vector<8x128xf32>
    %cst_5 = arith.constant 5.000000e-01 : f32
    %6 = vector.broadcast %cst_5 : f32 to vector<8x128xf32>
    %7 = arith.mulf %6, %5 : vector<8x128xf32>
    %cst_6 = arith.constant 0.707106769 : f32
    %8 = vector.broadcast %cst_6 : f32 to vector<8x128xf32>
    %9 = arith.mulf %5, %8 : vector<8x128xf32>
    %10 = math.erf %9 : vector<8x128xf32>
    %cst_7 = arith.constant 1.000000e+00 : f32
    %11 = vector.broadcast %cst_7 : f32 to vector<8x128xf32>
    %12 = arith.addf %11, %10 : vector<8x128xf32>
    %13 = arith.mulf %7, %12 : vector<8x128xf32>
    %cst_8 = arith.constant dense<0.000000e+00> : vector<8xf32>
    %14 = vector.multi_reduction <add>, %13, %cst_8 [1] : vector<8x128xf32> to vector<8xf32>
    %15 = vector.shape_cast %14 : vector<8xf32> to vector<8x1xf32>
    %cst_9 = arith.constant 1.280000e+02 : f32
    %16 = vector.broadcast %cst_9 : f32 to vector<8x1xf32>
    %17 = arith.divf %15, %16 : vector<8x1xf32>
    %18 = vector.broadcast %17 : vector<8x1xf32> to vector<8x128xf32>
    %19 = arith.subf %13, %18 : vector<8x128xf32>
    %20 = vector.broadcast %17 : vector<8x1xf32> to vector<8x128xf32>
    %21 = arith.subf %13, %20 : vector<8x128xf32>
    %22 = arith.mulf %19, %21 : vector<8x128xf32>
    %cst_10 = arith.constant dense<0.000000e+00> : vector<8xf32>
    %23 = vector.multi_reduction <add>, %22, %cst_10 [1] : vector<8x128xf32> to vector<8xf32>
    %24 = vector.shape_cast %23 : vector<8xf32> to vector<8x1xf32>
    %cst_11 = arith.constant 1.280000e+02 : f32
    %25 = vector.broadcast %cst_11 : f32 to vector<8x1xf32>
    %26 = arith.divf %24, %25 : vector<8x1xf32>
    %27 = vector.broadcast %17 : vector<8x1xf32> to vector<8x128xf32>
    %28 = arith.subf %13, %27 : vector<8x128xf32>
    %cst_12 = arith.constant 9.99999974E-6 : f32
    %29 = vector.broadcast %cst_12 : f32 to vector<8x1xf32>
    %30 = arith.addf %26, %29 : vector<8x1xf32>
    %31 = math.rsqrt %30 : vector<8x1xf32>
    %32 = vector.broadcast %31 : vector<8x1xf32> to vector<8x128xf32>
    %33 = arith.mulf %28, %32 : vector<8x128xf32>
    %c0_13 = arith.constant 0 : index
    %c0_14 = arith.constant 0 : index
    %34 = vector.load %arg4[%c0_13, %c0_14] : memref<1x128xf32, #tpu.memory_space<vmem>>, vector<1x128xf32>
    %35 = vector.broadcast %34 : vector<1x128xf32> to vector<8x128xf32>
    %36 = arith.mulf %33, %35 : vector<8x128xf32>
    %c0_15 = arith.constant 0 : index
    %c0_16 = arith.constant 0 : index
    %37 = vector.load %arg5[%c0_15, %c0_16] : memref<1x128xf32, #tpu.memory_space<vmem>>, vector<1x128xf32>
    %38 = vector.broadcast %37 : vector<1x128xf32> to vector<8x128xf32>
    %39 = arith.addf %36, %38 : vector<8x128xf32>
    %40 = arith.truncf %39 : vector<8x128xf32> to vector<8x128xbf16>
    %c0_17 = arith.constant 0 : index
    %c0_18 = arith.constant 0 : index
    %41 = vector.load %arg6[%c0_17, %c0_18] : memref<8x128xbf16, #tpu.memory_space<vmem>>, vector<8x128xbf16>
    tpu.vector_store %arg6[%c0_17, %c0_18], %40 {strides = array<i32>} : memref<8x128xbf16, #tpu.memory_space<vmem>>, vector<8x128xbf16>,
    return
  }
  func.func @transform_0(%arg0: i32) -> (i32, i32) {
    %c0_i32 = arith.constant 0 : i32
    %c0_i32_0 = arith.constant 0 : i32
    return %arg0, %c0_i32 : i32, i32
  }
  func.func @transform_1(%arg0: i32) -> (i32, i32) {
    %c0_i32 = arith.constant 0 : i32
    %c0_i32_0 = arith.constant 0 : i32
    %c0_i32_1 = arith.constant 0 : i32
    return %c0_i32, %c0_i32_0 : i32, i32
  }
  func.func @transform_2(%arg0: i32) -> (i32, i32) {
    %c0_i32 = arith.constant 0 : i32
    %c0_i32_0 = arith.constant 0 : i32
    %c0_i32_1 = arith.constant 0 : i32
    return %c0_i32, %c0_i32_0 : i32, i32
  }
  func.func @transform_3(%arg0: i32) -> (i32, i32) {
    %c0_i32 = arith.constant 0 : i32
    %c0_i32_0 = arith.constant 0 : i32
    %c0_i32_1 = arith.constant 0 : i32
    return %c0_i32, %c0_i32_0 : i32, i32
  }
  func.func @transform_4(%arg0: i32) -> (i32, i32) {
    %c0_i32 = arith.constant 0 : i32
    %c0_i32_0 = arith.constant 0 : i32
    %c0_i32_1 = arith.constant 0 : i32
    return %c0_i32, %c0_i32_0 : i32, i32
  }
  func.func @transform_5(%arg0: i32) -> (i32, i32) {
    %c0_i32 = arith.constant 0 : i32
    %c0_i32_0 = arith.constant 0 : i32
    return %arg0, %c0_i32 : i32, i32
  }
}

module attributes {stable_mosaic.version = 11 : i64} {
  func.func @_decoder_ce_kernel(%arg0: i32, %arg1: i32, %arg2: memref<8x1xi32, #tpu.memory_space<vmem>>, %arg3: memref<8x128xbf16, #tpu.memory_space<vmem>>, %arg4: memref<128x128xbf16, #tpu.memory_space<vmem>>, %arg5: memref<1x128xf32, #tpu.memory_space<vmem>>, %arg6: memref<8x128xf32, #tpu.memory_space<vmem>>, %arg7: memref<8x1xf32, #tpu.memory_space<vmem>>, %arg8: memref<2x8x1xf32, #tpu.memory_space<vmem>>, %arg9: memref<2x8x1xf32, #tpu.memory_space<vmem>>, %arg10: memref<2x8x1xf32, #tpu.memory_space<vmem>>) attributes {dimension_semantics = [#tpu.dimension_semantics<arbitrary>, #tpu.dimension_semantics<parallel>], iteration_bounds = array<i64: 4, 2>, scalar_prefetch = 0 : i64, scratch_operands = 3 : i64, tpu.core_type = #tpu.core_type<tc>, window_params = [{transform_indices = @transform_0, window_bounds = array<i64: 8, 1>}, {transform_indices = @transform_1, window_bounds = array<i64: 8, 128>}, {transform_indices = @transform_2, window_bounds = array<i64: 128, 128>}, {transform_indices = @transform_3, window_bounds = array<i64: 1, 128>}, {transform_indices = @transform_4, window_bounds = array<i64: 8, 128>}, {transform_indices = @transform_5, window_bounds = array<i64: 8, 1>}]} {
    %c0_i32 = arith.constant 0 : i32
    %0 = arith.cmpi eq, %arg0, %c0_i32 : i32
    %1 = arith.extui %0 : i1 to i32
    %c0_i32_0 = arith.constant 0 : i32
    %2 = arith.cmpi ne, %1, %c0_i32_0 : i32
    scf.if %2 {
      %cst_27 = arith.constant -1.000000e+30 : f32
      %58 = vector.broadcast %cst_27 : f32 to vector<8x1xf32>
      %59 = arith.index_cast %arg1 : i32 to index
      %c0_28 = arith.constant 0 : index
      %c0_29 = arith.constant 0 : index
      %60 = vector.load %arg8[%59, %c0_28, %c0_29] : memref<2x8x1xf32, #tpu.memory_space<vmem>>, vector<1x8x1xf32>
      %61 = vector.shape_cast %60 : vector<1x8x1xf32> to vector<8x1xf32>
      %62 = vector.shape_cast %58 : vector<8x1xf32> to vector<1x8x1xf32>
      tpu.vector_store %arg8[%59, %c0_28, %c0_29], %62 {strides = array<i32>} : memref<2x8x1xf32, #tpu.memory_space<vmem>>, vector<1x8x1xf32>,
      %cst_30 = arith.constant 0.000000e+00 : f32
      %63 = vector.broadcast %cst_30 : f32 to vector<8x1xf32>
      %64 = arith.index_cast %arg1 : i32 to index
      %c0_31 = arith.constant 0 : index
      %c0_32 = arith.constant 0 : index
      %65 = vector.load %arg9[%64, %c0_31, %c0_32] : memref<2x8x1xf32, #tpu.memory_space<vmem>>, vector<1x8x1xf32>
      %66 = vector.shape_cast %65 : vector<1x8x1xf32> to vector<8x1xf32>
      %67 = vector.shape_cast %63 : vector<8x1xf32> to vector<1x8x1xf32>
      tpu.vector_store %arg9[%64, %c0_31, %c0_32], %67 {strides = array<i32>} : memref<2x8x1xf32, #tpu.memory_space<vmem>>, vector<1x8x1xf32>,
      %cst_33 = arith.constant 0.000000e+00 : f32
      %68 = vector.broadcast %cst_33 : f32 to vector<8x1xf32>
      %69 = arith.index_cast %arg1 : i32 to index
      %c0_34 = arith.constant 0 : index
      %c0_35 = arith.constant 0 : index
      %70 = vector.load %arg10[%69, %c0_34, %c0_35] : memref<2x8x1xf32, #tpu.memory_space<vmem>>, vector<1x8x1xf32>
      %71 = vector.shape_cast %70 : vector<1x8x1xf32> to vector<8x1xf32>
      %72 = vector.shape_cast %68 : vector<8x1xf32> to vector<1x8x1xf32>
      tpu.vector_store %arg10[%69, %c0_34, %c0_35], %72 {strides = array<i32>} : memref<2x8x1xf32, #tpu.memory_space<vmem>>, vector<1x8x1xf32>,
    } else {
    }
    %c0 = arith.constant 0 : index
    %c0_1 = arith.constant 0 : index
    %3 = vector.load %arg3[%c0, %c0_1] : memref<8x128xbf16, #tpu.memory_space<vmem>>, vector<8x128xbf16>
    %c0_2 = arith.constant 0 : index
    %c0_3 = arith.constant 0 : index
    %4 = vector.load %arg4[%c0_2, %c0_3] : memref<128x128xbf16, #tpu.memory_space<vmem>>, vector<128x128xbf16>
    %cst = arith.constant dense<0.000000e+00> : vector<8x128xf32>
    %5 = tpu.matmul %3, %4, %cst {dimension_numbers = #tpu.dot_dimension_numbers<[1], [0], [0], [1], [0, 0, 1, 1], [], []>} : vector<8x128xbf16>, vector<128x128xbf16>, vector<8x128xf32> -> vector<8x128xf32>
    %c0_4 = arith.constant 0 : index
    %c0_5 = arith.constant 0 : index
    %6 = vector.load %arg5[%c0_4, %c0_5] : memref<1x128xf32, #tpu.memory_space<vmem>>, vector<1x128xf32>
    %7 = vector.broadcast %6 : vector<1x128xf32> to vector<8x128xf32>
    %8 = arith.addf %5, %7 : vector<8x128xf32>
    %c0_6 = arith.constant 0 : index
    %c0_7 = arith.constant 0 : index
    %9 = vector.load %arg6[%c0_6, %c0_7] : memref<8x128xf32, #tpu.memory_space<vmem>>, vector<8x128xf32>
    tpu.vector_store %arg6[%c0_6, %c0_7], %8 {strides = array<i32>} : memref<8x128xf32, #tpu.memory_space<vmem>>, vector<8x128xf32>,
    %c0_8 = arith.constant 0 : index
    %c0_9 = arith.constant 0 : index
    %10 = vector.load %arg2[%c0_8, %c0_9] : memref<8x1xi32, #tpu.memory_space<vmem>>, vector<8x1xi32>
    %c128_i32 = arith.constant 128 : i32
    %11 = arith.muli %arg0, %c128_i32 : i32
    %12 = tpu.iota {dimensions = array<i32: 1>} : vector<8x128xi32>
    %13 = vector.broadcast %11 : i32 to vector<8x128xi32>
    %14 = arith.addi %13, %12 : vector<8x128xi32>
    %15 = arith.index_cast %arg1 : i32 to index
    %c0_10 = arith.constant 0 : index
    %c0_11 = arith.constant 0 : index
    %16 = vector.load %arg8[%15, %c0_10, %c0_11] : memref<2x8x1xf32, #tpu.memory_space<vmem>>, vector<1x8x1xf32>
    %17 = vector.shape_cast %16 : vector<1x8x1xf32> to vector<8x1xf32>
    %cst_12 = arith.constant dense<0xFF800000> : vector<8xf32>
    %18 = vector.multi_reduction <maximumf>, %8, %cst_12 [1] : vector<8x128xf32> to vector<8xf32>
    %19 = vector.shape_cast %18 : vector<8xf32> to vector<8x1xf32>
    %20 = arith.maximumf %17, %19 : vector<8x1xf32>
    %21 = arith.subf %17, %20 : vector<8x1xf32>
    %22 = math.exp %21 : vector<8x1xf32>
    %23 = arith.index_cast %arg1 : i32 to index
    %c0_13 = arith.constant 0 : index
    %c0_14 = arith.constant 0 : index
    %24 = vector.load %arg9[%23, %c0_13, %c0_14] : memref<2x8x1xf32, #tpu.memory_space<vmem>>, vector<1x8x1xf32>
    %25 = vector.shape_cast %24 : vector<1x8x1xf32> to vector<8x1xf32>
    %26 = arith.mulf %22, %25 : vector<8x1xf32>
    %27 = vector.broadcast %20 : vector<8x1xf32> to vector<8x128xf32>
    %28 = arith.subf %8, %27 : vector<8x128xf32>
    %29 = math.exp %28 : vector<8x128xf32>
    %cst_15 = arith.constant dense<0.000000e+00> : vector<8xf32>
    %30 = vector.multi_reduction <add>, %29, %cst_15 [1] : vector<8x128xf32> to vector<8xf32>
    %31 = vector.shape_cast %30 : vector<8xf32> to vector<8x1xf32>
    %32 = arith.addf %26, %31 : vector<8x1xf32>
    %33 = arith.index_cast %arg1 : i32 to index
    %c0_16 = arith.constant 0 : index
    %c0_17 = arith.constant 0 : index
    %34 = vector.load %arg9[%33, %c0_16, %c0_17] : memref<2x8x1xf32, #tpu.memory_space<vmem>>, vector<1x8x1xf32>
    %35 = vector.shape_cast %34 : vector<1x8x1xf32> to vector<8x1xf32>
    %36 = vector.shape_cast %32 : vector<8x1xf32> to vector<1x8x1xf32>
    tpu.vector_store %arg9[%33, %c0_16, %c0_17], %36 {strides = array<i32>} : memref<2x8x1xf32, #tpu.memory_space<vmem>>, vector<1x8x1xf32>,
    %37 = arith.index_cast %arg1 : i32 to index
    %c0_18 = arith.constant 0 : index
    %c0_19 = arith.constant 0 : index
    %38 = vector.load %arg10[%37, %c0_18, %c0_19] : memref<2x8x1xf32, #tpu.memory_space<vmem>>, vector<1x8x1xf32>
    %39 = vector.shape_cast %38 : vector<1x8x1xf32> to vector<8x1xf32>
    %40 = vector.broadcast %10 : vector<8x1xi32> to vector<8x128xi32>
    %41 = arith.cmpi eq, %14, %40 : vector<8x128xi32>
    %cst_20 = arith.constant 0.000000e+00 : f32
    %42 = vector.broadcast %cst_20 : f32 to vector<8x128xf32>
    %43 = arith.select %41, %8, %42 : vector<8x128xi1>, vector<8x128xf32>
    %cst_21 = arith.constant dense<0.000000e+00> : vector<8xf32>
    %44 = vector.multi_reduction <add>, %43, %cst_21 [1] : vector<8x128xf32> to vector<8xf32>
    %45 = vector.shape_cast %44 : vector<8xf32> to vector<8x1xf32>
    %46 = arith.addf %39, %45 : vector<8x1xf32>
    %47 = arith.index_cast %arg1 : i32 to index
    %c0_22 = arith.constant 0 : index
    %c0_23 = arith.constant 0 : index
    %48 = vector.load %arg10[%47, %c0_22, %c0_23] : memref<2x8x1xf32, #tpu.memory_space<vmem>>, vector<1x8x1xf32>
    %49 = vector.shape_cast %48 : vector<1x8x1xf32> to vector<8x1xf32>
    %50 = vector.shape_cast %46 : vector<8x1xf32> to vector<1x8x1xf32>
    tpu.vector_store %arg10[%47, %c0_22, %c0_23], %50 {strides = array<i32>} : memref<2x8x1xf32, #tpu.memory_space<vmem>>, vector<1x8x1xf32>,
    %51 = arith.index_cast %arg1 : i32 to index
    %c0_24 = arith.constant 0 : index
    %c0_25 = arith.constant 0 : index
    %52 = vector.load %arg8[%51, %c0_24, %c0_25] : memref<2x8x1xf32, #tpu.memory_space<vmem>>, vector<1x8x1xf32>
    %53 = vector.shape_cast %52 : vector<1x8x1xf32> to vector<8x1xf32>
    %54 = vector.shape_cast %20 : vector<8x1xf32> to vector<1x8x1xf32>
    tpu.vector_store %arg8[%51, %c0_24, %c0_25], %54 {strides = array<i32>} : memref<2x8x1xf32, #tpu.memory_space<vmem>>, vector<1x8x1xf32>,
    %c3_i32 = arith.constant 3 : i32
    %55 = arith.cmpi eq, %arg0, %c3_i32 : i32
    %56 = arith.extui %55 : i1 to i32
    %c0_i32_26 = arith.constant 0 : i32
    %57 = arith.cmpi ne, %56, %c0_i32_26 : i32
    scf.if %57 {
      %58 = arith.index_cast %arg1 : i32 to index
      %c0_27 = arith.constant 0 : index
      %c0_28 = arith.constant 0 : index
      %59 = vector.load %arg8[%58, %c0_27, %c0_28] : memref<2x8x1xf32, #tpu.memory_space<vmem>>, vector<1x8x1xf32>
      %60 = vector.shape_cast %59 : vector<1x8x1xf32> to vector<8x1xf32>
      %61 = arith.index_cast %arg1 : i32 to index
      %c0_29 = arith.constant 0 : index
      %c0_30 = arith.constant 0 : index
      %62 = vector.load %arg9[%61, %c0_29, %c0_30] : memref<2x8x1xf32, #tpu.memory_space<vmem>>, vector<1x8x1xf32>
      %63 = vector.shape_cast %62 : vector<1x8x1xf32> to vector<8x1xf32>
      %64 = math.log %63 : vector<8x1xf32>
      %65 = arith.addf %60, %64 : vector<8x1xf32>
      %66 = arith.index_cast %arg1 : i32 to index
      %c0_31 = arith.constant 0 : index
      %c0_32 = arith.constant 0 : index
      %67 = vector.load %arg10[%66, %c0_31, %c0_32] : memref<2x8x1xf32, #tpu.memory_space<vmem>>, vector<1x8x1xf32>
      %68 = vector.shape_cast %67 : vector<1x8x1xf32> to vector<8x1xf32>
      %69 = arith.subf %65, %68 : vector<8x1xf32>
      %c0_33 = arith.constant 0 : index
      %c0_34 = arith.constant 0 : index
      %70 = vector.load %arg2[%c0_33, %c0_34] : memref<8x1xi32, #tpu.memory_space<vmem>>, vector<8x1xi32>
      %c0_i32_35 = arith.constant 0 : i32
      %71 = vector.broadcast %c0_i32_35 : i32 to vector<8x1xi32>
      %72 = arith.cmpi sge, %70, %71 : vector<8x1xi32>
      %cst_36 = arith.constant 0.000000e+00 : f32
      %73 = vector.broadcast %cst_36 : f32 to vector<8x1xf32>
      %74 = arith.select %72, %69, %73 : vector<8x1xi1>, vector<8x1xf32>
      %c0_37 = arith.constant 0 : index
      %c0_38 = arith.constant 0 : index
      %75 = vector.load %arg7[%c0_37, %c0_38] : memref<8x1xf32, #tpu.memory_space<vmem>>, vector<8x1xf32>
      tpu.vector_store %arg7[%c0_37, %c0_38], %74 {strides = array<i32>} : memref<8x1xf32, #tpu.memory_space<vmem>>, vector<8x1xf32>,
    } else {
    }
    return
  }
  func.func @transform_0(%arg0: i32, %arg1: i32) -> (i32, i32) {
    %c0_i32 = arith.constant 0 : i32
    %c0_i32_0 = arith.constant 0 : i32
    return %arg1, %c0_i32 : i32, i32
  }
  func.func @transform_1(%arg0: i32, %arg1: i32) -> (i32, i32) {
    %c0_i32 = arith.constant 0 : i32
    %c0_i32_0 = arith.constant 0 : i32
    return %arg1, %c0_i32 : i32, i32
  }
  func.func @transform_2(%arg0: i32, %arg1: i32) -> (i32, i32) {
    %c0_i32 = arith.constant 0 : i32
    %c0_i32_0 = arith.constant 0 : i32
    return %c0_i32, %arg0 : i32, i32
  }
  func.func @transform_3(%arg0: i32, %arg1: i32) -> (i32, i32) {
    %c0_i32 = arith.constant 0 : i32
    %c0_i32_0 = arith.constant 0 : i32
    return %c0_i32, %arg0 : i32, i32
  }
  func.func @transform_4(%arg0: i32, %arg1: i32) -> (i32, i32) {
    %c0_i32 = arith.constant 0 : i32
    return %arg1, %arg0 : i32, i32
  }
  func.func @transform_5(%arg0: i32, %arg1: i32) -> (i32, i32) {
    %c0_i32 = arith.constant 0 : i32
    %c0_i32_0 = arith.constant 0 : i32
    return %arg1, %c0_i32 : i32, i32
  }
}

</mosaic_0001>

<llo_original>
// kernel: model_forward.3
$region0: #{model_forward.3}
  #allocation0 [shape = 'u32[]', space=smem, size = 0x4, offset = 0x4, fixed_abs, tag = 'smem constant byte address 0x4 - core index']
  #allocation1 [shape = 'u32[144,128]{1,0:T(1,128)}', space=vmem, size = 0x12000, scoped, tag = 'internal scratch']
  #allocation2 [shape = 'f32[2,8,1]{2,1,0:T(8,128)}', space=vmem, size = 0x2000, scoped, tag = 'scratch operand']
  #allocation3 [shape = 'f32[2,8,1]{2,1,0:T(8,128)}', space=vmem, size = 0x2000, scoped, tag = 'scratch operand']
  #allocation4 [shape = 'f32[2,8,1]{2,1,0:T(8,128)}', space=vmem, size = 0x2000, scoped, tag = 'scratch operand']
  %s0 = inlined_call_operand.vmem [shape: s32[16,1], index: 0, kind: input, shape index: {}]
  %s1 = inlined_call_operand.vmem [shape: bf16[16,128], index: 1, kind: input, shape index: {}]
  %s2 = inlined_call_operand.vmem [shape: bf16[128,512], index: 2, kind: input, shape index: {}]
  %s3 = inlined_call_operand.vmem [shape: f32[1,512], index: 3, kind: input, shape index: {}]
  %s4 = inlined_call_operand.hbm [shape: f32[16,512], index: 4, kind: output, shape index: {0}]
  %s5 = inlined_call_operand.vmem [shape: f32[16,1], index: 5, kind: output, shape index: {1}]
  %6 = xla_tuple %s4, %s5
  %s7 = sld [smem:[#allocation0]]
  $region106: #{model_forward.3} parent=0
    _
  %s9 = ssub.s32 1, %s7
  %s10 = scalar_select 0, %s9, %s7
  $region1: #{model_forward.3} parent=0
    #allocation5 [shape = 'u8[65536]{0}', space=vmem, size = 0x10000, scoped, tag = 'input window, operand 2']
    #allocation6 [shape = 'u8[8192]{0}', space=vmem, size = 0x2000, scoped, tag = 'output window, operand 0']
    #allocation7 [shape = 's32[2]{0}', space=sflag, size = 0x8, scoped, tag = 'scoped memory for model_forward.3']
    %11 = vsyncpa [#allocation7], 0
    %s12 = scalar_lea.sflag [#allocation7], 1
    %13 = vsyncpa %s12, 0
    loop: start=0, step=1, limit=10
    $region2: #{model_forward.3} parent=1 // loop_pre_header
      _
    $region3: #{model_forward.3} parent=1 // loop_header
      %s15 = sphi 0, %s19
      %p16 = scmp.ge.s32.totalorder %s15, 10
      %s22 = sphi 0, %s34
      %s23 = sphi 0, %s30
      %s24 = sphi 0, %s22
      %s25 = sphi 0, %s23
      %s26 = sphi 0, %s24
      %s27 = sphi 0, %s25
      %s37 = sphi 0, %s39
      %s40 = sphi 0, %s37
      %s41 = sphi 0, %s40
      %s57 = sphi 0, %s41
      %s63 = sphi 0, %s65
      %s66 = sphi 0, %s63
      %s67 = sphi 0, %s66
      %s83 = sphi 0, %s67
      %s89 = sphi 0, %s91
      %s92 = sphi 0, %s89
      %s93 = sphi 0, %s92
      %s109 = sphi 0, %s93
      %s115 = sphi 0, %s117
      %s118 = sphi 0, %s115
      %s119 = sphi 0, %s118
      %s135 = sphi 0, %s119
      %s143 = sphi 0, %s145
      %s146 = sphi 0, %s143
      %s147 = sphi 0, %s146
      %s163 = sphi 0, %s147
      %s169 = sphi 0, %s171
      %s172 = sphi 0, %s169
      %s173 = sphi 0, %s172
      %s189 = sphi 0, %s173
    $region4: #{model_forward.3} parent=1 // loop_header_branch
      %18 = sbr.rel (%p16) target = $region8
    $region5: #{model_forward.3} parent=1 // loop_body
      %s20 = ssub.s32 %s15, 1
      %s21 = ssub.s32 %s15, 2
      %s28 = sadd.s32 1, %s23
      %p29 = scmp.ge.s32.totalorder %s28, 2
      %s30 = scalar_select %p29, 0, %s28
      %s31 = sadd.s32 1, %s22
      %s32 = scalar_select %p29, %s31, %s22
      %p33 = scmp.ge.s32.totalorder %s32, 4
      %s34 = scalar_select %p33, 0, %s32
      %s35 = ssub.s32 %s23, %s30
      %p36 = scmp.eq.s32.totalorder %s35, 0
      %s38 = sadd.s32 %s37, 1
      %s39 = scalar_select %p36, %s37, %s38
      %p42 = pneg %p36
      %p43 = scmp.eq.s32.totalorder %s15, 7
      %p44 = por %p42, %p43
      %p45 = scmp.ne.s32.totalorder %s37, %s40
      %p46 = scmp.eq.s32.totalorder %s15, 0
      %p47 = por %p45, %p46
      %p48 = scmp.ne.s32.totalorder %s37, %s40
      %p49 = scmp.eq.s32.totalorder %s20, 7
      %p50 = por %p48, %p49
      %p51 = scmp.ne.s32.totalorder %s40, %s41
      %p52 = scmp.eq.s32.totalorder %s20, 0
      %p53 = por %p51, %p52
      %p54 = scmp.ne.s32.totalorder %s40, %s41
      %p55 = scmp.eq.s32.totalorder %s21, 7
      %p56 = por %p54, %p55
      %p58 = scmp.ne.s32.totalorder %s41, %s57
      %p59 = scmp.eq.s32.totalorder %s21, 0
      %p60 = por %p58, %p59
      %s61 = ssub.s32 %s23, %s30
      %p62 = scmp.eq.s32.totalorder %s61, 0
      %s64 = sadd.s32 %s63, 1
      %s65 = scalar_select %p62, %s63, %s64
      %p68 = pneg %p62
      %p69 = scmp.eq.s32.totalorder %s15, 7
      %p70 = por %p68, %p69
      %p71 = scmp.ne.s32.totalorder %s63, %s66
      %p72 = scmp.eq.s32.totalorder %s15, 0
      %p73 = por %p71, %p72
      %p74 = scmp.ne.s32.totalorder %s63, %s66
      %p75 = scmp.eq.s32.totalorder %s20, 7
      %p76 = por %p74, %p75
      %p77 = scmp.ne.s32.totalorder %s66, %s67
      %p78 = scmp.eq.s32.totalorder %s20, 0
      %p79 = por %p77, %p78
      %p80 = scmp.ne.s32.totalorder %s66, %s67
      %p81 = scmp.eq.s32.totalorder %s21, 7
      %p82 = por %p80, %p81
      %p84 = scmp.ne.s32.totalorder %s67, %s83
      %p85 = scmp.eq.s32.totalorder %s21, 0
      %p86 = por %p84, %p85
      %s87 = ssub.s32 %s22, %s34
      %p88 = scmp.eq.s32.totalorder %s87, 0
      %s90 = sadd.s32 %s89, 1
      %s91 = scalar_select %p88, %s89, %s90
      %p94 = pneg %p88
      %p95 = scmp.eq.s32.totalorder %s15, 7
      %p96 = por %p94, %p95
      %p97 = scmp.ne.s32.totalorder %s89, %s92
      %p98 = scmp.eq.s32.totalorder %s15, 0
      %p99 = por %p97, %p98
      %p100 = scmp.ne.s32.totalorder %s89, %s92
      %p101 = scmp.eq.s32.totalorder %s20, 7
      %p102 = por %p100, %p101
      %p103 = scmp.ne.s32.totalorder %s92, %s93
      %p104 = scmp.eq.s32.totalorder %s20, 0
      %p105 = por %p103, %p104
      %p106 = scmp.ne.s32.totalorder %s92, %s93
      %p107 = scmp.eq.s32.totalorder %s21, 7
      %p108 = por %p106, %p107
      %p110 = scmp.ne.s32.totalorder %s93, %s109
      %p111 = scmp.eq.s32.totalorder %s21, 0
      %p112 = por %p110, %p111
      %s113 = ssub.s32 %s22, %s34
      %p114 = scmp.eq.s32.totalorder %s113, 0
      %s116 = sadd.s32 %s115, 1
      %s117 = scalar_select %p114, %s115, %s116
      %p120 = pneg %p114
      %p121 = scmp.eq.s32.totalorder %s15, 7
      %p122 = por %p120, %p121
      %p123 = scmp.ne.s32.totalorder %s115, %s118
      %p124 = scmp.eq.s32.totalorder %s15, 0
      %p125 = por %p123, %p124
      %p126 = scmp.ne.s32.totalorder %s115, %s118
      %p127 = scmp.eq.s32.totalorder %s20, 7
      %p128 = por %p126, %p127
      %p129 = scmp.ne.s32.totalorder %s118, %s119
      %p130 = scmp.eq.s32.totalorder %s20, 0
      %p131 = por %p129, %p130
      %p132 = scmp.ne.s32.totalorder %s118, %s119
      %p133 = scmp.eq.s32.totalorder %s21, 7
      %p134 = por %p132, %p133
      %p136 = scmp.ne.s32.totalorder %s119, %s135
      %p137 = scmp.eq.s32.totalorder %s21, 0
      %p138 = por %p136, %p137
      %s139 = ssub.s32 %s23, %s30
      %s140 = ssub.s32 %s22, %s34
      %s141 = sor.u32 %s139, %s140
      %p142 = scmp.eq.s32.totalorder %s141, 0
      %s144 = sadd.s32 %s143, 1
      %s145 = scalar_select %p142, %s143, %s144
      %p148 = pneg %p142
      %p149 = scmp.eq.s32.totalorder %s15, 7
      %p150 = por %p148, %p149
      %p151 = scmp.ne.s32.totalorder %s143, %s146
      %p152 = scmp.eq.s32.totalorder %s15, 0
      %p153 = por %p151, %p152
      %p154 = scmp.ne.s32.totalorder %s143, %s146
      %p155 = scmp.eq.s32.totalorder %s20, 7
      %p156 = por %p154, %p155
      %p157 = scmp.ne.s32.totalorder %s146, %s147
      %p158 = scmp.eq.s32.totalorder %s20, 0
      %p159 = por %p157, %p158
      %p160 = scmp.ne.s32.totalorder %s146, %s147
      %p161 = scmp.eq.s32.totalorder %s21, 7
      %p162 = por %p160, %p161
      %p164 = scmp.ne.s32.totalorder %s147, %s163
      %p165 = scmp.eq.s32.totalorder %s21, 0
      %p166 = por %p164, %p165
      %s167 = ssub.s32 %s23, %s30
      %p168 = scmp.eq.s32.totalorder %s167, 0
      %s170 = sadd.s32 %s169, 1
      %s171 = scalar_select %p168, %s169, %s170
      %p174 = pneg %p168
      %p175 = scmp.eq.s32.totalorder %s15, 7
      %p176 = por %p174, %p175
      %p177 = scmp.ne.s32.totalorder %s169, %s172
      %p178 = scmp.eq.s32.totalorder %s15, 0
      %p179 = por %p177, %p178
      %p180 = scmp.ne.s32.totalorder %s169, %s172
      %p181 = scmp.eq.s32.totalorder %s20, 7
      %p182 = por %p180, %p181
      %p183 = scmp.ne.s32.totalorder %s172, %s173
      %p184 = scmp.eq.s32.totalorder %s20, 0
      %p185 = por %p183, %p184
      %p186 = scmp.ne.s32.totalorder %s172, %s173
      %p187 = scmp.eq.s32.totalorder %s21, 7
      %p188 = por %p186, %p187
      %p190 = scmp.ne.s32.totalorder %s173, %s189
      %p191 = scmp.eq.s32.totalorder %s21, 0
      %p192 = por %p190, %p191
      %p193 = scmp.le.s32.totalorder 1, %s15
      %p194 = scmp.lt.s32.totalorder %s15, 9
      %p195 = pnand %p193, %p194
      %p196 = pneg %p195
      // Predicated region
      $region9: #{model_forward.3} parent=5 // pred_check
        _
      $region10: #{model_forward.3} parent=5 // pred_check_branch
        %198 = sbr.rel (%p195) target = $region12
      $region11: #{model_forward.3} parent=5 // pred_region
        %s199 = ssub.s32 %s15, 1
      $region12: #{model_forward.3} parent=5 // pred_fallthru
        _
      %p200 = scmp.lt.s32.totalorder %s15, 8
      // Predicated region
      $region13: #{model_forward.3} parent=5 // pred_check
        %p201 = pneg %p200
      $region14: #{model_forward.3} parent=5 // pred_check_branch
        %203 = sbr.rel (%p201) target = $region16
      $region15: #{model_forward.3} parent=5 // pred_region
        // Predicated region
        $region17: #{model_forward.3} parent=15 // pred_check
          %p204 = pneg %p47
        $region18: #{model_forward.3} parent=15 // pred_check_branch
          %206 = sbr.rel (%p204) target = $region20
        $region19: #{model_forward.3} parent=15 // pred_region
          %p207 = scmp.lt.s32.totalorder %s23, 1
          %s208 = scalar_select %p207, %s23, 1
          %s209 = smul.addr %s208, 8
          %s210 = scalar_lea.vmem %s0, %s209
        $region20: #{model_forward.3} parent=15 // pred_fallthru
          _
        // Predicated region
        $region21: #{model_forward.3} parent=15 // pred_check
          %p211 = pneg %p73
        $region22: #{model_forward.3} parent=15 // pred_check_branch
          %213 = sbr.rel (%p211) target = $region24
        $region23: #{model_forward.3} parent=15 // pred_region
          %p214 = scmp.lt.s32.totalorder %s23, 1
          %s215 = scalar_select %p214, %s23, 1
          %s216 = smul.addr %s215, 4
          %s217 = scalar_lea.vmem %s1, %s216
        $region24: #{model_forward.3} parent=15 // pred_fallthru
          _
        // Predicated region
        $region25: #{model_forward.3} parent=15 // pred_check
          %p218 = pneg %p99
        $region26: #{model_forward.3} parent=15 // pred_check_branch
          %220 = sbr.rel (%p218) target = $region28
        $region27: #{model_forward.3} parent=15 // pred_region
          %s221 = sand.u32 %s89, 1
          %s222 = sand.u32 %s89, 1
          %s223 = smul.addr %s222, 64
          %s224 = scalar_lea.vmem [#allocation5], %s223
          %s225 = smul.addr %s22, 4
          %s226 = scalar_lea.vmem %s2, %s225
          // Predicated region
          $region29: #{model_forward.3} parent=27 // pred_check
            _
          $region30: #{model_forward.3} parent=27 // pred_check_branch
            %228 = sbr.rel (0) target = $region32
          $region31: #{model_forward.3} parent=27 // pred_region
            // Predicated region
            $region33: #{model_forward.3} parent=31 // pred_check
              _
            $region34: #{model_forward.3} parent=31 // pred_check_branch
              %230 = sbr.rel target = $region36
            $region35: #{model_forward.3} parent=31 // pred_region
              // Predicated region
              $region48: #{model_forward.3} parent=35 // pred_check
                _
              $region49: #{model_forward.3} parent=35 // pred_check_branch
                %275 = sbr.rel (0) target = $region51
              $region50: #{model_forward.3} parent=35 // pred_region
                loop: start=0, step=1, limit=1
                $region52: #{model_forward.3} parent=50 // loop_pre_header
                  _
                $region53: #{model_forward.3} parent=50 // loop_header
                  %s277 = sphi 0, %s281
                  %p278 = scmp.ge.s32.totalorder %s277, 1
                  %s282 = sphi %s226, %s226
                  %s283 = sphi %s224, %s224
                $region54: #{model_forward.3} parent=50 // loop_header_branch
                  %280 = sbr.rel (%p278) target = $region58
                $region55: #{model_forward.3} parent=50 // loop_body
                  _
                $region56: #{model_forward.3} parent=50 // loop_footer
                  %s281 = sadd.s32 1, %s277
                $region57: #{model_forward.3} parent=50 // loop_footer_branch
                  %276 = sbr.rel target = $region53
                $region58: #{model_forward.3} parent=50 // loop_exit
                  _
                loop: start=0, step=1, limit=1
                $region59: #{model_forward.3} parent=50 // loop_pre_header
                  _
                $region60: #{model_forward.3} parent=50 // loop_header
                  %s286 = sphi 0, %s290
                  %p287 = scmp.ge.s32.totalorder %s286, 1
                  %s291 = sphi %s226, %s226
                  %s292 = sphi %s224, %s224
                $region61: #{model_forward.3} parent=50 // loop_header_branch
                  %289 = sbr.rel (%p287) target = $region65
                $region62: #{model_forward.3} parent=50 // loop_body
                  %v293 = vld [vmem:[%s291] sm:$0xf]
                  %294 = vst [vmem:[%s292] sm:$0xf] %v293
                  %v295 = vld [vmem:[%s291 + $0x10] sm:$0xf]
                  %296 = vst [vmem:[%s292 + $0x4] sm:$0xf] %v295
                  %v297 = vld [vmem:[%s291 + $0x20] sm:$0xf]
                  %298 = vst [vmem:[%s292 + $0x8] sm:$0xf] %v297
                  %v299 = vld [vmem:[%s291 + $0x30] sm:$0xf]
                  %300 = vst [vmem:[%s292 + $0xc] sm:$0xf] %v299
                  %v301 = vld [vmem:[%s291 + $0x40] sm:$0xf]
                  %302 = vst [vmem:[%s292 + $0x10] sm:$0xf] %v301
                  %v303 = vld [vmem:[%s291 + $0x50] sm:$0xf]
                  %304 = vst [vmem:[%s292 + $0x14] sm:$0xf] %v303
                  %v305 = vld [vmem:[%s291 + $0x60] sm:$0xf]
                  %306 = vst [vmem:[%s292 + $0x18] sm:$0xf] %v305
                  %v307 = vld [vmem:[%s291 + $0x70] sm:$0xf]
                  %308 = vst [vmem:[%s292 + $0x1c] sm:$0xf] %v307
                  %v309 = vld [vmem:[%s291 + $0x80] sm:$0xf]
                  %310 = vst [vmem:[%s292 + $0x20] sm:$0xf] %v309
                  %v311 = vld [vmem:[%s291 + $0x90] sm:$0xf]
                  %312 = vst [vmem:[%s292 + $0x24] sm:$0xf] %v311
                  %v313 = vld [vmem:[%s291 + $0xa0] sm:$0xf]
                  %314 = vst [vmem:[%s292 + $0x28] sm:$0xf] %v313
                  %v315 = vld [vmem:[%s291 + $0xb0] sm:$0xf]
                  %316 = vst [vmem:[%s292 + $0x2c] sm:$0xf] %v315
                  %v317 = vld [vmem:[%s291 + $0xc0] sm:$0xf]
                  %318 = vst [vmem:[%s292 + $0x30] sm:$0xf] %v317
                  %v319 = vld [vmem:[%s291 + $0xd0] sm:$0xf]
                  %320 = vst [vmem:[%s292 + $0x34] sm:$0xf] %v319
                  %v321 = vld [vmem:[%s291 + $0xe0] sm:$0xf]
                  %322 = vst [vmem:[%s292 + $0x38] sm:$0xf] %v321
                  %v323 = vld [vmem:[%s291 + $0xf0] sm:$0xf]
                  %324 = vst [vmem:[%s292 + $0x3c] sm:$0xf] %v323
                $region63: #{model_forward.3} parent=50 // loop_footer
                  %s290 = sadd.s32 1, %s286
                $region64: #{model_forward.3} parent=50 // loop_footer_branch
                  %285 = sbr.rel target = $region60
                $region65: #{model_forward.3} parent=50 // loop_exit
                  _
              $region51: #{model_forward.3} parent=35 // pred_fallthru
                _
            $region36: #{model_forward.3} parent=31 // pred_fallthru
              _
            // Predicated region
            $region37: #{model_forward.3} parent=31 // pred_check
              _
            $region38: #{model_forward.3} parent=31 // pred_check_branch
              %232 = sbr.rel (0) target = $region40
            $region39: #{model_forward.3} parent=31 // pred_region
              loop: start=0, step=1, limit=1
              $region41: #{model_forward.3} parent=39 // loop_pre_header
                _
              $region42: #{model_forward.3} parent=39 // loop_header
                %s235 = sphi 0, %s239
                %p236 = scmp.ge.s32.totalorder %s235, 1
                %s240 = sphi %s226, %s226
                %s241 = sphi %s224, %s224
              $region43: #{model_forward.3} parent=39 // loop_header_branch
                %238 = sbr.rel (%p236) target = $region47
              $region44: #{model_forward.3} parent=39 // loop_body
                %v242 = vld [vmem:[%s240] sm:$0xf]
                %243 = vst [vmem:[%s241] sm:$0xf] %v242
                %v244 = vld [vmem:[%s240 + $0x10] sm:$0xf]
                %245 = vst [vmem:[%s241 + $0x4] sm:$0xf] %v244
                %v246 = vld [vmem:[%s240 + $0x20] sm:$0xf]
                %247 = vst [vmem:[%s241 + $0x8] sm:$0xf] %v246
                %v248 = vld [vmem:[%s240 + $0x30] sm:$0xf]
                %249 = vst [vmem:[%s241 + $0xc] sm:$0xf] %v248
                %v250 = vld [vmem:[%s240 + $0x40] sm:$0xf]
                %251 = vst [vmem:[%s241 + $0x10] sm:$0xf] %v250
                %v252 = vld [vmem:[%s240 + $0x50] sm:$0xf]
                %253 = vst [vmem:[%s241 + $0x14] sm:$0xf] %v252
                %v254 = vld [vmem:[%s240 + $0x60] sm:$0xf]
                %255 = vst [vmem:[%s241 + $0x18] sm:$0xf] %v254
                %v256 = vld [vmem:[%s240 + $0x70] sm:$0xf]
                %257 = vst [vmem:[%s241 + $0x1c] sm:$0xf] %v256
                %v258 = vld [vmem:[%s240 + $0x80] sm:$0xf]
                %259 = vst [vmem:[%s241 + $0x20] sm:$0xf] %v258
                %v260 = vld [vmem:[%s240 + $0x90] sm:$0xf]
                %261 = vst [vmem:[%s241 + $0x24] sm:$0xf] %v260
                %v262 = vld [vmem:[%s240 + $0xa0] sm:$0xf]
                %263 = vst [vmem:[%s241 + $0x28] sm:$0xf] %v262
                %v264 = vld [vmem:[%s240 + $0xb0] sm:$0xf]
                %265 = vst [vmem:[%s241 + $0x2c] sm:$0xf] %v264
                %v266 = vld [vmem:[%s240 + $0xc0] sm:$0xf]
                %267 = vst [vmem:[%s241 + $0x30] sm:$0xf] %v266
                %v268 = vld [vmem:[%s240 + $0xd0] sm:$0xf]
                %269 = vst [vmem:[%s241 + $0x34] sm:$0xf] %v268
                %v270 = vld [vmem:[%s240 + $0xe0] sm:$0xf]
                %271 = vst [vmem:[%s241 + $0x38] sm:$0xf] %v270
                %v272 = vld [vmem:[%s240 + $0xf0] sm:$0xf]
                %273 = vst [vmem:[%s241 + $0x3c] sm:$0xf] %v272
              $region45: #{model_forward.3} parent=39 // loop_footer
                %s239 = sadd.s32 1, %s235
              $region46: #{model_forward.3} parent=39 // loop_footer_branch
                %234 = sbr.rel target = $region42
              $region47: #{model_forward.3} parent=39 // loop_exit
                _
            $region40: #{model_forward.3} parent=31 // pred_fallthru
              _
          $region32: #{model_forward.3} parent=27 // pred_fallthru
            _
          %325 = vnop
        $region28: #{model_forward.3} parent=15 // pred_fallthru
          _
        // Predicated region
        $region66: #{model_forward.3} parent=15 // pred_check
          %p326 = pneg %p125
        $region67: #{model_forward.3} parent=15 // pred_check_branch
          %328 = sbr.rel (%p326) target = $region69
        $region68: #{model_forward.3} parent=15 // pred_region
          %p329 = scmp.lt.s32.totalorder %s22, 3
          %s330 = scalar_select %p329, %s22, 3
          %s331 = scalar_lea.vmem %s3, %s330
        $region69: #{model_forward.3} parent=15 // pred_fallthru
          _
      $region16: #{model_forward.3} parent=5 // pred_fallthru
        _
      %p332 = scmp.le.s32.totalorder 1, %s15
      %p333 = scmp.lt.s32.totalorder %s15, 9
      %p334 = pnand %p332, %p333
      %p335 = pneg %p334
      // Predicated region
      $region70: #{model_forward.3} parent=5 // pred_check
        _
      $region71: #{model_forward.3} parent=5 // pred_check_branch
        %337 = sbr.rel (%p334) target = $region73
      $region72: #{model_forward.3} parent=5 // pred_region
        %s338 = ssub.s32 %s15, 1
        %s339 = sand.u32 %s92, 1
        %s340 = sand.u32 %s92, 1
        %s341 = smul.addr %s340, 64
        %s342 = scalar_lea.vmem [#allocation5], %s341
        // Predicated region
        $region74: #{model_forward.3} parent=72 // pred_check
          %p343 = pneg %p105
        $region75: #{model_forward.3} parent=72 // pred_check_branch
          %345 = sbr.rel (%p343) target = $region77
        $region76: #{model_forward.3} parent=72 // pred_region
          _
        $region77: #{model_forward.3} parent=72 // pred_fallthru
          _
        %p346 = scmp.lt.s32.totalorder %s25, 1
        %s347 = scalar_select %p346, %s25, 1
        %s348 = smul.addr %s347, 8
        %s349 = scalar_lea.vmem %s0, %s348
        %p350 = pneg %p53
        %p351 = pneg %p50
        %p352 = scmp.lt.s32.totalorder %s25, 1
        %s353 = scalar_select %p352, %s25, 1
        %s354 = smul.addr %s353, 4
        %s355 = scalar_lea.vmem %s1, %s354
        %p356 = pneg %p79
        %p357 = pneg %p76
        %s358 = sand.u32 %s92, 1
        %s359 = sand.u32 %s92, 1
        %s360 = smul.addr %s359, 64
        %s361 = scalar_lea.vmem [#allocation5], %s360
        %p362 = pneg %p105
        %p363 = pneg %p102
        %p364 = scmp.lt.s32.totalorder %s24, 3
        %s365 = scalar_select %p364, %s24, 3
        %s366 = scalar_lea.vmem %s3, %s365
        %p367 = pneg %p131
        %p368 = pneg %p128
        %p369 = pneg %p159
        %p370 = pneg %p156
        %s371 = sand.u32 %s146, 1
        %s372 = scalar_lea.sflag [#allocation7], %s371
        %s373 = sand.u32 %s146, 1
        %s374 = smul.addr %s373, 8
        %s375 = scalar_lea.vmem [#allocation6], %s374
        %p376 = pneg %p185
        %p377 = pneg %p182
        %p378 = scmp.lt.s32.totalorder %s25, 1
        %s379 = scalar_select %p378, %s25, 1
        %s380 = smul.addr %s379, 8
        %s381 = scalar_lea.vmem %s5, %s380
        %p382 = scmp.lt.s32.totalorder %s25, 1
        %s383 = scalar_select %p382, %s25, 1
        %s384 = smul.addr %s383, 8
        %s385 = scalar_lea.vmem %s0, %s384
        %p386 = scmp.lt.s32.totalorder %s25, 1
        %s387 = scalar_select %p386, %s25, 1
        %s388 = smul.addr %s387, 4
        %s389 = scalar_lea.vmem %s1, %s388
        %p390 = scmp.lt.s32.totalorder %s24, 3
        %s391 = scalar_select %p390, %s24, 3
        %s392 = scalar_lea.vmem %s3, %s391
        %p393 = scmp.lt.s32.totalorder %s25, 1
        %s394 = scalar_select %p393, %s25, 1
        %s395 = smul.addr %s394, 8
        %s396 = scalar_lea.vmem %s5, %s395
        %p398 = scmp.eq.s32.totalorder %s24, 0
        // Predicated region
        $region78: #{model_forward.3} parent=72 // pred_check
          %p399 = pneg %p398
        $region79: #{model_forward.3} parent=72 // pred_check_branch
          %401 = sbr.rel (%p399) target = $region81
        $region80: #{model_forward.3} parent=72 // pred_region
          %s402 = smul.u32 %s25, 8
          %s403 = scalar_lea.vmem [#allocation2], %s402
          %vm404 = vcmask 7168
          %405 = vst.msk [vmem:[%s403] sm:$0xff] %vm404, -1e+30
          %s406 = scalar_lea.vmem [#allocation3], %s402
          %407 = vst.msk [vmem:[%s406] sm:$0xff] %vm404, 0.0
          %s408 = scalar_lea.vmem [#allocation4], %s402
          %409 = vst.msk [vmem:[%s408] sm:$0xff] %vm404, 0.0
        $region81: #{model_forward.3} parent=72 // pred_fallthru
          _
        %v410 = vld [vmem:[%s389] sm:$0xf]
        %v411 = vld [vmem:[%s342] sm:$0xf]
        %v412 = vld [vmem:[%s342 + $0x4] sm:$0xf]
        %v413 = vld [vmem:[%s342 + $0x8] sm:$0xf]
        %v414 = vld [vmem:[%s342 + $0xc] sm:$0xf]
        %v415 = vld [vmem:[%s342 + $0x10] sm:$0xf]
        %v416 = vld [vmem:[%s342 + $0x14] sm:$0xf]
        %v417 = vld [vmem:[%s342 + $0x18] sm:$0xf]
        %v418 = vld [vmem:[%s342 + $0x1c] sm:$0xf]
        %v419 = vld [vmem:[%s342 + $0x20] sm:$0xf]
        %v420 = vld [vmem:[%s342 + $0x24] sm:$0xf]
        %v421 = vld [vmem:[%s342 + $0x28] sm:$0xf]
        %v422 = vld [vmem:[%s342 + $0x2c] sm:$0xf]
        %v423 = vld [vmem:[%s342 + $0x30] sm:$0xf]
        %v424 = vld [vmem:[%s342 + $0x34] sm:$0xf]
        %v425 = vld [vmem:[%s342 + $0x38] sm:$0xf]
        %v426 = vld [vmem:[%s342 + $0x3c] sm:$0xf]
        %v427 = vld [vmem:[%s392] sm:$0x1]
        %v429 = vlaneseq
        %v430 = vshrl.u32 %v429, 7
        %v431 = vsub.s32 0, %v430
        %v432 = vrot.slane %v427, %v431
        %v450 = vunpack.c.l.b16 %v411
        %v451 = vunpack.c.l.b16 %v412
        %v452 = vunpack.c.l.b16 %v413
        %v453 = vunpack.c.l.b16 %v414
        %v454 = vunpack.c.l.b16 %v415
        %v455 = vunpack.c.l.b16 %v416
        %v456 = vunpack.c.l.b16 %v417
        %v457 = vunpack.c.l.b16 %v418
        %v458 = vunpack.c.l.b16 %v419
        %v459 = vunpack.c.l.b16 %v420
        %v460 = vunpack.c.l.b16 %v421
        %v461 = vunpack.c.l.b16 %v422
        %v462 = vunpack.c.l.b16 %v423
        %v463 = vunpack.c.l.b16 %v424
        %v464 = vunpack.c.l.b16 %v425
        %v465 = vunpack.c.l.b16 %v426
        %v466 = vpack.c.b16 %v451, %v450
        %v467 = vpack.c.b16 %v453, %v452
        %v468 = vpack.c.b16 %v455, %v454
        %v469 = vpack.c.b16 %v457, %v456
        %v470 = vpack.c.b16 %v459, %v458
        %v471 = vpack.c.b16 %v461, %v460
        %v472 = vpack.c.b16 %v463, %v462
        %v473 = vpack.c.b16 %v465, %v464
        %482 = vmatprep.subr.bf16.mxu0 0
        %483 = vmatpush1.bf16.msra.mxu0 %v466
        %484 = vmatprep.subr.bf16.mxu0 0
        %485 = vmatpush1.bf16.msra.mxu0 %v467
        %486 = vmatprep.subr.bf16.mxu0 0
        %487 = vmatpush1.bf16.msra.mxu0 %v468
        %488 = vmatprep.subr.bf16.mxu0 0
        %489 = vmatpush1.bf16.msra.mxu0 %v469
        %490 = vmatprep.subr.bf16.mxu0 0
        %491 = vmatpush1.bf16.msra.mxu0 %v470
        %492 = vmatprep.subr.bf16.mxu0 0
        %493 = vmatpush1.bf16.msra.mxu0 %v471
        %494 = vmatprep.subr.bf16.mxu0 0
        %495 = vmatpush1.bf16.msra.mxu0 %v472
        %496 = vmatprep.subr.bf16.mxu0 0
        %497 = vmatpush1.bf16.msra.mxu0 %v473
        %498 = vmatprep.subr.bf16.mxu0 0
        %499 = vmatpush1.bf16.msra.mxu0 0
        %500 = vmatprep.subr.bf16.mxu0 0
        %501 = vmatpush1.bf16.msra.mxu0 0
        %502 = vmatprep.subr.bf16.mxu0 0
        %503 = vmatpush1.bf16.msra.mxu0 0
        %504 = vmatprep.subr.bf16.mxu0 0
        %505 = vmatpush1.bf16.msra.mxu0 0
        %506 = vmatprep.subr.bf16.mxu0 0
        %507 = vmatpush1.bf16.msra.mxu0 0
        %508 = vmatprep.subr.bf16.mxu0 0
        %509 = vmatpush1.bf16.msra.mxu0 0
        %510 = vmatprep.subr.bf16.mxu0 0
        %511 = vmatpush1.bf16.msra.mxu0 0
        %512 = vmatprep.subr.bf16.mxu0 0
        %513 = vmatpush1.bf16.msra.mxu0 0
        %514 = vmatprep.mubr.bf16.mxu0 0
        %515 = vmatmul.mubr.bf16.gmra.mrb[0].mxu0 %v410
        %v516 = vpop.f32.mrb[0].mxu0
        %v517 = vadd.f32 %v432, %v516
        %v518 = vpop.f32.mrb[0].mxu0
        %v519 = vpop.f32.mrb[0].mxu0
        %v520 = vpop.f32.mrb[0].mxu0
        %521 = vdwg.mxu0
        %522 = vst [vmem:[%s375] sm:$0xff] %v517
        %v523 = vld [vmem:[%s385] sm:$0xff]
        %s524 = smul.u32 %s24, 128
        %v525 = vlaneseq
        %v526 = vand.u32 %v525, 127
        %v527 = vstv %s524
        %v528 = vadd.s32 %v527, %v526
        %s529 = smul.u32 %s25, 8
        %s530 = scalar_lea.vmem [#allocation2], %s529
        %v531 = vld [vmem:[%s530] sm:$0xff]
        %532 = vmax.xlane.f32.xlu0 %v517
        %v533 = vpop.xlane.xlu0 %532
        %v534 = vmax.f32 %v531, %v533
        %v535 = vsub.f32 %v531, %v534
        %v536 = vmul.f32 %v535, 1.442695
        %v537 = vpow.pop %v536
        %s538 = scalar_lea.vmem [#allocation3], %s529
        %v539 = vld [vmem:[%s538] sm:$0xff]
        %v540 = vmul.f32 %v537, %v539
        %542 = vset.pattern.permute.xlu0 0
        %543 = vperm.xlu0 %542, %v534
        %v544 = vpop.permute.xlu0 %543
        %v546 = vsub.f32 %v517, %v544
        %v547 = vmul.f32 %v546, 1.442695
        %v548 = vpow.pop %v547
        %549 = vadd.xlane.f32.xlu0 %v548
        %v550 = vpop.xlane.xlu0 %549
        %v551 = vadd.f32 %v540, %v550
        %vm552 = vcmask 7168
        %553 = vst.msk [vmem:[%s538] sm:$0xff] %vm552, %v551
        %s554 = scalar_lea.vmem [#allocation4], %s529
        %v555 = vld [vmem:[%s554] sm:$0xff]
        %556 = vset.pattern.permute.xlu0 0
        %557 = vperm.xlu0 %556, %v523
        %v558 = vpop.permute.xlu0 %557
        %vm559 = vcmp.eq.s32.totalorder %v528, %v558
        %v560 = vsel %vm559, %v517, 0.0
        %561 = vadd.xlane.f32.xlu0 %v560
        %v562 = vpop.xlane.xlu0 %561
        %v563 = vadd.f32 %v555, %v562
        %564 = vst.msk [vmem:[%s554] sm:$0xff] %vm552, %v563
        %565 = vst.msk [vmem:[%s530] sm:$0xff] %vm552, %v534
        %p566 = scmp.eq.s32.totalorder %s24, 3
        // Predicated region
        $region82: #{model_forward.3} parent=72 // pred_check
          %p567 = pneg %p566
        $region83: #{model_forward.3} parent=72 // pred_check_branch
          %569 = sbr.rel (%p567) target = $region85
        $region84: #{model_forward.3} parent=72 // pred_region
          %v570 = vld [vmem:[%s530] sm:$0xff]
          %v571 = vld [vmem:[%s538] sm:$0xff]
          %v572 = vlog2.pop %v571
          %v573 = vmul.f32 %v572, 0.6931472
          %v574 = vadd.f32 %v570, %v573
          %v575 = vld [vmem:[%s554] sm:$0xff]
          %v576 = vsub.f32 %v574, %v575
          %v577 = vld [vmem:[%s385] sm:$0xff]
          %vm578 = vcmp.ge.s32.totalorder %v577, 0
          %v579 = vsel %vm578, %v576, 0.0
          %580 = vst.msk [vmem:[%s396] sm:$0xff] %vm552, %v579
        $region85: #{model_forward.3} parent=72 // pred_fallthru
          _
        %s581 = sand.u32 %s146, 1
        %s582 = scalar_lea.sflag [#allocation7], %s581
        %s583 = sand.u32 %s146, 1
        %s584 = smul.addr %s583, 8
        %s585 = scalar_lea.vmem [#allocation6], %s584
        %p586 = scmp.lt.s32.totalorder %s25, 1
        %s587 = scalar_select %p586, %s25, 1
        %s588 = smul.addr %s587, 8
        %s589 = scalar_lea.vmem %s5, %s588
        // Predicated region
        $region86: #{model_forward.3} parent=72 // pred_check
          %p590 = pneg %p156
        $region87: #{model_forward.3} parent=72 // pred_check_branch
          %592 = sbr.rel (%p590) target = $region89
        $region88: #{model_forward.3} parent=72 // pred_region
          %s594 = ssub.s32 128, 128
          %595 = vsyncadd %s582, %s594
          %s596 = smul.addr %s25, 4
          %s597 = sadd.s32 %s24, %s596
          %s598 = smul.addr %s597, 128
          %s599 = scalar_lea.hbm %s4, %s598
          %s601 = sshll.u32 %s585, 4
          %s602 = int_to_ptr.vmem [resolvable:$true] %s601
          %604 = dma.vmem_to_hbm [thread:$0]  %s602, 128, %s599, %s582
        $region89: #{model_forward.3} parent=72 // pred_fallthru
          _
        // Predicated region
        $region90: #{model_forward.3} parent=72 // pred_check
          %p605 = pneg %p182
        $region91: #{model_forward.3} parent=72 // pred_check_branch
          %607 = sbr.rel (%p605) target = $region93
        $region92: #{model_forward.3} parent=72 // pred_region
          _
        $region93: #{model_forward.3} parent=72 // pred_fallthru
          _
      $region73: #{model_forward.3} parent=5 // pred_fallthru
        _
      %p608 = scmp.le.s32.totalorder 2, %s15
      // Predicated region
      $region94: #{model_forward.3} parent=5 // pred_check
        %p609 = pneg %p608
      $region95: #{model_forward.3} parent=5 // pred_check_branch
        %611 = sbr.rel (%p609) target = $region97
      $region96: #{model_forward.3} parent=5 // pred_region
        %s612 = ssub.s32 %s15, 2
        // Predicated region
        $region98: #{model_forward.3} parent=96 // pred_check
          %p613 = pneg %p162
        $region99: #{model_forward.3} parent=96 // pred_check_branch
          %615 = sbr.rel (%p613) target = $region101
        $region100: #{model_forward.3} parent=96 // pred_region
          %s616 = sand.u32 %s147, 1
          %s617 = scalar_lea.sflag [#allocation7], %s616
          %s618 = sand.u32 %s147, 1
          %s619 = smul.addr %s618, 8
          %s620 = scalar_lea.vmem [#allocation6], %s619
          %621 = dma.done %s617, 128
        $region101: #{model_forward.3} parent=96 // pred_fallthru
          _
        // Predicated region
        $region102: #{model_forward.3} parent=96 // pred_check
          %p622 = pneg %p188
        $region103: #{model_forward.3} parent=96 // pred_check_branch
          %624 = sbr.rel (%p622) target = $region105
        $region104: #{model_forward.3} parent=96 // pred_region
          %p625 = scmp.lt.s32.totalorder %s27, 1
          %s626 = scalar_select %p625, %s27, 1
          %s627 = smul.addr %s626, 8
          %s628 = scalar_lea.vmem %s5, %s627
        $region105: #{model_forward.3} parent=96 // pred_fallthru
          _
      $region97: #{model_forward.3} parent=5 // pred_fallthru
        _
    $region6: #{model_forward.3} parent=1 // loop_footer
      %s19 = sadd.s32 1, %s15
    $region7: #{model_forward.3} parent=1 // loop_footer_branch
      %14 = sbr.rel target = $region3
    $region8: #{model_forward.3} parent=1 // loop_exit
      _
    %629 = vsyncpa [#allocation7], 1
    %s630 = scalar_lea.sflag [#allocation7], 1
    %631 = vsyncpa %s630, 1

// kernel: model_forward.2
$region0: #{model_forward.2}
  #allocation0 [shape = 'u32[]', space=smem, size = 0x4, offset = 0x4, fixed_abs, tag = 'smem constant byte address 0x4 - core index']
  #allocation1 [shape = 'u32[144,128]{1,0:T(1,128)}', space=vmem, size = 0x12000, scoped, tag = 'internal scratch']
  %s0 = inlined_call_operand.vmem [shape: bf16[16,128], index: 0, kind: input, shape index: {}]
  %s1 = inlined_call_operand.vmem [shape: bf16[128,128], index: 1, kind: input, shape index: {}]
  %s2 = inlined_call_operand.hbm [shape: f32[1,128], index: 2, kind: input, shape index: {}]
  %s3 = inlined_call_operand.hbm [shape: f32[1,128], index: 3, kind: input, shape index: {}]
  %s4 = inlined_call_operand.hbm [shape: f32[1,128], index: 4, kind: input, shape index: {}]
  %s5 = inlined_call_operand.vmem [shape: bf16[16,128], index: 5, kind: output, shape index: {}]
  %s6 = sld [smem:[#allocation0]]
  $region65: #{model_forward.2} parent=0
    _
  %s8 = ssub.s32 1, %s6
  %s9 = scalar_select 0, %s8, %s6
  $region1: #{model_forward.2} parent=0
    #allocation2 [shape = 'u8[512]{0}', space=vmem, size = 0x400, scoped, tag = 'input window, operand 2, single buffered']
    #allocation3 [shape = 's32[2]{0}', space=sflag, size = 0x8, scoped, tag = 'scoped memory for model_forward.2']
    #allocation4 [shape = 'u8[512]{0}', space=vmem, size = 0x400, scoped, tag = 'input window, operand 3, single buffered']
    #allocation5 [shape = 's32[1]{0}', space=sflag, size = 0x4, scoped, tag = 'scoped memory for model_forward.2']
    #allocation6 [shape = 'u8[512]{0}', space=vmem, size = 0x400, scoped, tag = 'input window, operand 4, single buffered']
    %10 = vsyncpa [#allocation3], 0
    %11 = vsyncpa [#allocation5], 0
    loop: start=0, step=1, limit=4
    $region2: #{model_forward.2} parent=1 // loop_pre_header
      _
    $region3: #{model_forward.2} parent=1 // loop_header
      %s13 = sphi 0, %s17
      %p14 = scmp.ge.s32.totalorder %s13, 4
      %s23 = sphi 0, %s25
      %s26 = sphi 0, %s23
      %s27 = sphi 0, %s26
      %s43 = sphi 0, %s27
      %s47 = sphi 0, %s47
      %s49 = sphi 0, %s47
      %s50 = sphi 0, %s49
      %s64 = sphi 0, %s50
      %s68 = sphi 0, %s68
      %s70 = sphi 0, %s68
      %s71 = sphi 0, %s70
      %s85 = sphi 0, %s71
      %s89 = sphi 0, %s89
      %s91 = sphi 0, %s89
      %s92 = sphi 0, %s91
      %s106 = sphi 0, %s92
      %s110 = sphi 0, %s110
      %s112 = sphi 0, %s110
      %s113 = sphi 0, %s112
      %s127 = sphi 0, %s113
      %s133 = sphi 0, %s135
      %s136 = sphi 0, %s133
      %s137 = sphi 0, %s136
      %s153 = sphi 0, %s137
    $region4: #{model_forward.2} parent=1 // loop_header_branch
      %16 = sbr.rel (%p14) target = $region8
    $region5: #{model_forward.2} parent=1 // loop_body
      %s18 = ssub.s32 %s13, 1
      %s19 = ssub.s32 %s13, 2
      %s20 = sadd.s32 %s13, 1
      %s21 = ssub.s32 %s13, %s20
      %p22 = scmp.eq.s32.totalorder %s21, 0
      %s24 = sadd.s32 %s23, 1
      %s25 = scalar_select %p22, %s23, %s24
      %p28 = pneg %p22
      %p29 = scmp.eq.s32.totalorder %s13, 1
      %p30 = por %p28, %p29
      %p31 = scmp.ne.s32.totalorder %s23, %s26
      %p32 = scmp.eq.s32.totalorder %s13, 0
      %p33 = por %p31, %p32
      %p34 = scmp.ne.s32.totalorder %s23, %s26
      %p35 = scmp.eq.s32.totalorder %s18, 1
      %p36 = por %p34, %p35
      %p37 = scmp.ne.s32.totalorder %s26, %s27
      %p38 = scmp.eq.s32.totalorder %s18, 0
      %p39 = por %p37, %p38
      %p40 = scmp.ne.s32.totalorder %s26, %s27
      %p41 = scmp.eq.s32.totalorder %s19, 1
      %p42 = por %p40, %p41
      %p44 = scmp.ne.s32.totalorder %s27, %s43
      %p45 = scmp.eq.s32.totalorder %s19, 0
      %p46 = por %p44, %p45
      %s48 = sadd.s32 %s47, 1
      %p51 = scmp.eq.s32.totalorder %s13, 1
      %p52 = scmp.ne.s32.totalorder %s47, %s49
      %p53 = scmp.eq.s32.totalorder %s13, 0
      %p54 = por %p52, %p53
      %p55 = scmp.ne.s32.totalorder %s47, %s49
      %p56 = scmp.eq.s32.totalorder %s18, 1
      %p57 = por %p55, %p56
      %p58 = scmp.ne.s32.totalorder %s49, %s50
      %p59 = scmp.eq.s32.totalorder %s18, 0
      %p60 = por %p58, %p59
      %p61 = scmp.ne.s32.totalorder %s49, %s50
      %p62 = scmp.eq.s32.totalorder %s19, 1
      %p63 = por %p61, %p62
      %p65 = scmp.ne.s32.totalorder %s50, %s64
      %p66 = scmp.eq.s32.totalorder %s19, 0
      %p67 = por %p65, %p66
      %s69 = sadd.s32 %s68, 1
      %p72 = scmp.eq.s32.totalorder %s13, 1
      %p73 = scmp.ne.s32.totalorder %s68, %s70
      %p74 = scmp.eq.s32.totalorder %s13, 0
      %p75 = por %p73, %p74
      %p76 = scmp.ne.s32.totalorder %s68, %s70
      %p77 = scmp.eq.s32.totalorder %s18, 1
      %p78 = por %p76, %p77
      %p79 = scmp.ne.s32.totalorder %s70, %s71
      %p80 = scmp.eq.s32.totalorder %s18, 0
      %p81 = por %p79, %p80
      %p82 = scmp.ne.s32.totalorder %s70, %s71
      %p83 = scmp.eq.s32.totalorder %s19, 1
      %p84 = por %p82, %p83
      %p86 = scmp.ne.s32.totalorder %s71, %s85
      %p87 = scmp.eq.s32.totalorder %s19, 0
      %p88 = por %p86, %p87
      %s90 = sadd.s32 %s89, 1
      %p93 = scmp.eq.s32.totalorder %s13, 1
      %p94 = scmp.ne.s32.totalorder %s89, %s91
      %p95 = scmp.eq.s32.totalorder %s13, 0
      %p96 = por %p94, %p95
      %p97 = scmp.ne.s32.totalorder %s89, %s91
      %p98 = scmp.eq.s32.totalorder %s18, 1
      %p99 = por %p97, %p98
      %p100 = scmp.ne.s32.totalorder %s91, %s92
      %p101 = scmp.eq.s32.totalorder %s18, 0
      %p102 = por %p100, %p101
      %p103 = scmp.ne.s32.totalorder %s91, %s92
      %p104 = scmp.eq.s32.totalorder %s19, 1
      %p105 = por %p103, %p104
      %p107 = scmp.ne.s32.totalorder %s92, %s106
      %p108 = scmp.eq.s32.totalorder %s19, 0
      %p109 = por %p107, %p108
      %s111 = sadd.s32 %s110, 1
      %p114 = scmp.eq.s32.totalorder %s13, 1
      %p115 = scmp.ne.s32.totalorder %s110, %s112
      %p116 = scmp.eq.s32.totalorder %s13, 0
      %p117 = por %p115, %p116
      %p118 = scmp.ne.s32.totalorder %s110, %s112
      %p119 = scmp.eq.s32.totalorder %s18, 1
      %p120 = por %p118, %p119
      %p121 = scmp.ne.s32.totalorder %s112, %s113
      %p122 = scmp.eq.s32.totalorder %s18, 0
      %p123 = por %p121, %p122
      %p124 = scmp.ne.s32.totalorder %s112, %s113
      %p125 = scmp.eq.s32.totalorder %s19, 1
      %p126 = por %p124, %p125
      %p128 = scmp.ne.s32.totalorder %s113, %s127
      %p129 = scmp.eq.s32.totalorder %s19, 0
      %p130 = por %p128, %p129
      %s131 = ssub.s32 %s13, %s20
      %p132 = scmp.eq.s32.totalorder %s131, 0
      %s134 = sadd.s32 %s133, 1
      %s135 = scalar_select %p132, %s133, %s134
      %p138 = pneg %p132
      %p139 = scmp.eq.s32.totalorder %s13, 1
      %p140 = por %p138, %p139
      %p141 = scmp.ne.s32.totalorder %s133, %s136
      %p142 = scmp.eq.s32.totalorder %s13, 0
      %p143 = por %p141, %p142
      %p144 = scmp.ne.s32.totalorder %s133, %s136
      %p145 = scmp.eq.s32.totalorder %s18, 1
      %p146 = por %p144, %p145
      %p147 = scmp.ne.s32.totalorder %s136, %s137
      %p148 = scmp.eq.s32.totalorder %s18, 0
      %p149 = por %p147, %p148
      %p150 = scmp.ne.s32.totalorder %s136, %s137
      %p151 = scmp.eq.s32.totalorder %s19, 1
      %p152 = por %p150, %p151
      %p154 = scmp.ne.s32.totalorder %s137, %s153
      %p155 = scmp.eq.s32.totalorder %s19, 0
      %p156 = por %p154, %p155
      %p157 = scmp.le.s32.totalorder 1, %s13
      %p158 = scmp.lt.s32.totalorder %s13, 3
      %p159 = pnand %p157, %p158
      %p160 = pneg %p159
      // Predicated region
      $region9: #{model_forward.2} parent=5 // pred_check
        _
      $region10: #{model_forward.2} parent=5 // pred_check_branch
        %162 = sbr.rel (%p159) target = $region12
      $region11: #{model_forward.2} parent=5 // pred_region
        %s163 = ssub.s32 %s13, 1
        // Predicated region
        $region13: #{model_forward.2} parent=11 // pred_check
          %p164 = pneg %p60
        $region14: #{model_forward.2} parent=11 // pred_check_branch
          %166 = sbr.rel (%p164) target = $region16
        $region15: #{model_forward.2} parent=11 // pred_region
          _
        $region16: #{model_forward.2} parent=11 // pred_fallthru
          _
        // Predicated region
        $region17: #{model_forward.2} parent=11 // pred_check
          %p167 = pneg %p81
        $region18: #{model_forward.2} parent=11 // pred_check_branch
          %169 = sbr.rel (%p167) target = $region20
        $region19: #{model_forward.2} parent=11 // pred_region
          %s171 = ssub.s32 16, 16
          %172 = vsyncadd [#allocation3], %s171
          %s174 = sshll.u32 [#allocation2], 4
          %s175 = int_to_ptr.vmem [resolvable:$true] %s174
          %177 = dma.hbm_to_vmem [thread:$0]  %s2, 16, %s175, [#allocation3]
        $region20: #{model_forward.2} parent=11 // pred_fallthru
          _
        // Predicated region
        $region21: #{model_forward.2} parent=11 // pred_check
          %p178 = pneg %p102
        $region22: #{model_forward.2} parent=11 // pred_check_branch
          %180 = sbr.rel (%p178) target = $region24
        $region23: #{model_forward.2} parent=11 // pred_region
          %s182 = ssub.s32 16, 16
          %183 = vsyncadd [#allocation5], %s182
          %s185 = sshll.u32 [#allocation4], 4
          %s186 = int_to_ptr.vmem [resolvable:$true] %s185
          %188 = dma.hbm_to_vmem [thread:$0]  %s3, 16, %s186, [#allocation5]
        $region24: #{model_forward.2} parent=11 // pred_fallthru
          _
        // Predicated region
        $region25: #{model_forward.2} parent=11 // pred_check
          %p189 = pneg %p123
        $region26: #{model_forward.2} parent=11 // pred_check_branch
          %191 = sbr.rel (%p189) target = $region28
        $region27: #{model_forward.2} parent=11 // pred_region
          %s193 = ssub.s32 16, 16
          %194 = vsyncadd [#allocation5], %s193
          %s196 = sshll.u32 [#allocation6], 4
          %s197 = int_to_ptr.vmem [resolvable:$true] %s196
          %199 = dma.hbm_to_vmem [thread:$0]  %s4, 16, %s197, [#allocation5]
        $region28: #{model_forward.2} parent=11 // pred_fallthru
          _
      $region12: #{model_forward.2} parent=5 // pred_fallthru
        _
      %p200 = scmp.lt.s32.totalorder %s13, 2
      // Predicated region
      $region29: #{model_forward.2} parent=5 // pred_check
        %p201 = pneg %p200
      $region30: #{model_forward.2} parent=5 // pred_check_branch
        %203 = sbr.rel (%p201) target = $region32
      $region31: #{model_forward.2} parent=5 // pred_region
        // Predicated region
        $region33: #{model_forward.2} parent=31 // pred_check
          %p204 = pneg %p33
        $region34: #{model_forward.2} parent=31 // pred_check_branch
          %206 = sbr.rel (%p204) target = $region36
        $region35: #{model_forward.2} parent=31 // pred_region
          %p207 = scmp.lt.s32.totalorder %s13, 1
          %s208 = scalar_select %p207, %s13, 1
          %s209 = smul.addr %s208, 4
          %s210 = scalar_lea.vmem %s0, %s209
        $region36: #{model_forward.2} parent=31 // pred_fallthru
          _
      $region32: #{model_forward.2} parent=5 // pred_fallthru
        _
      %p211 = scmp.le.s32.totalorder 1, %s13
      %p212 = scmp.lt.s32.totalorder %s13, 3
      %p213 = pnand %p211, %p212
      %p214 = pneg %p213
      // Predicated region
      $region37: #{model_forward.2} parent=5 // pred_check
        _
      $region38: #{model_forward.2} parent=5 // pred_check_branch
        %216 = sbr.rel (%p213) target = $region40
      $region39: #{model_forward.2} parent=5 // pred_region
        %s217 = ssub.s32 %s13, 1
        // Predicated region
        $region41: #{model_forward.2} parent=39 // pred_check
          %p218 = pneg %p81
        $region42: #{model_forward.2} parent=39 // pred_check_branch
          %220 = sbr.rel (%p218) target = $region44
        $region43: #{model_forward.2} parent=39 // pred_region
          %221 = dma.done [#allocation3], 16
        $region44: #{model_forward.2} parent=39 // pred_fallthru
          _
        // Predicated region
        $region45: #{model_forward.2} parent=39 // pred_check
          %p222 = pneg %p102
        $region46: #{model_forward.2} parent=39 // pred_check_branch
          %224 = sbr.rel (%p222) target = $region48
        $region47: #{model_forward.2} parent=39 // pred_region
          %225 = dma.done [#allocation5], 16
        $region48: #{model_forward.2} parent=39 // pred_fallthru
          _
        // Predicated region
        $region49: #{model_forward.2} parent=39 // pred_check
          %p226 = pneg %p123
        $region50: #{model_forward.2} parent=39 // pred_check_branch
          %228 = sbr.rel (%p226) target = $region52
        $region51: #{model_forward.2} parent=39 // pred_region
          %229 = dma.done [#allocation5], 16
        $region52: #{model_forward.2} parent=39 // pred_fallthru
          _
        %p230 = scmp.lt.s32.totalorder %s18, 1
        %s231 = scalar_select %p230, %s18, 1
        %s232 = smul.addr %s231, 4
        %s233 = scalar_lea.vmem %s0, %s232
        %p234 = pneg %p39
        %p235 = pneg %p36
        %p236 = pneg %p60
        %p237 = pneg %p57
        %p238 = pneg %p81
        %p239 = pneg %p78
        %p240 = pneg %p102
        %p241 = pneg %p99
        %p242 = pneg %p123
        %p243 = pneg %p120
        %p244 = pneg %p149
        %p245 = pneg %p146
        %p246 = scmp.lt.s32.totalorder %s18, 1
        %s247 = scalar_select %p246, %s18, 1
        %s248 = smul.addr %s247, 4
        %s249 = scalar_lea.vmem %s5, %s248
        %p250 = scmp.lt.s32.totalorder %s18, 1
        %s251 = scalar_select %p250, %s18, 1
        %s252 = smul.addr %s251, 4
        %s253 = scalar_lea.vmem %s0, %s252
        %p254 = scmp.lt.s32.totalorder %s18, 1
        %s255 = scalar_select %p254, %s18, 1
        %s256 = smul.addr %s255, 4
        %s257 = scalar_lea.vmem %s5, %s256
        %v259 = vld [vmem:[%s253] sm:$0xf]
        %v260 = vld [vmem:[%s1] sm:$0xf]
        %v261 = vld [vmem:[%s1 + $0x4] sm:$0xf]
        %v262 = vld [vmem:[%s1 + $0x8] sm:$0xf]
        %v263 = vld [vmem:[%s1 + $0xc] sm:$0xf]
        %v264 = vld [vmem:[%s1 + $0x10] sm:$0xf]
        %v265 = vld [vmem:[%s1 + $0x14] sm:$0xf]
        %v266 = vld [vmem:[%s1 + $0x18] sm:$0xf]
        %v267 = vld [vmem:[%s1 + $0x1c] sm:$0xf]
        %v268 = vld [vmem:[%s1 + $0x20] sm:$0xf]
        %v269 = vld [vmem:[%s1 + $0x24] sm:$0xf]
        %v270 = vld [vmem:[%s1 + $0x28] sm:$0xf]
        %v271 = vld [vmem:[%s1 + $0x2c] sm:$0xf]
        %v272 = vld [vmem:[%s1 + $0x30] sm:$0xf]
        %v273 = vld [vmem:[%s1 + $0x34] sm:$0xf]
        %v274 = vld [vmem:[%s1 + $0x38] sm:$0xf]
        %v275 = vld [vmem:[%s1 + $0x3c] sm:$0xf]
        %v276 = vld [vmem:[#allocation2] sm:$0x1]
        %v278 = vlaneseq
        %v279 = vshrl.u32 %v278, 7
        %v280 = vsub.s32 0, %v279
        %v281 = vrot.slane %v276, %v280
        %v299 = vunpack.c.l.b16 %v260
        %v300 = vunpack.c.l.b16 %v261
        %v301 = vunpack.c.l.b16 %v262
        %v302 = vunpack.c.l.b16 %v263
        %v303 = vunpack.c.l.b16 %v264
        %v304 = vunpack.c.l.b16 %v265
        %v305 = vunpack.c.l.b16 %v266
        %v306 = vunpack.c.l.b16 %v267
        %v307 = vunpack.c.l.b16 %v268
        %v308 = vunpack.c.l.b16 %v269
        %v309 = vunpack.c.l.b16 %v270
        %v310 = vunpack.c.l.b16 %v271
        %v311 = vunpack.c.l.b16 %v272
        %v312 = vunpack.c.l.b16 %v273
        %v313 = vunpack.c.l.b16 %v274
        %v314 = vunpack.c.l.b16 %v275
        %v315 = vpack.c.b16 %v300, %v299
        %v316 = vpack.c.b16 %v302, %v301
        %v317 = vpack.c.b16 %v304, %v303
        %v318 = vpack.c.b16 %v306, %v305
        %v319 = vpack.c.b16 %v308, %v307
        %v320 = vpack.c.b16 %v310, %v309
        %v321 = vpack.c.b16 %v312, %v311
        %v322 = vpack.c.b16 %v314, %v313
        %331 = vmatprep.subr.bf16.mxu0 0
        %332 = vmatpush1.bf16.msra.mxu0 %v315
        %333 = vmatprep.subr.bf16.mxu0 0
        %334 = vmatpush1.bf16.msra.mxu0 %v316
        %335 = vmatprep.subr.bf16.mxu0 0
        %336 = vmatpush1.bf16.msra.mxu0 %v317
        %337 = vmatprep.subr.bf16.mxu0 0
        %338 = vmatpush1.bf16.msra.mxu0 %v318
        %339 = vmatprep.subr.bf16.mxu0 0
        %340 = vmatpush1.bf16.msra.mxu0 %v319
        %341 = vmatprep.subr.bf16.mxu0 0
        %342 = vmatpush1.bf16.msra.mxu0 %v320
        %343 = vmatprep.subr.bf16.mxu0 0
        %344 = vmatpush1.bf16.msra.mxu0 %v321
        %345 = vmatprep.subr.bf16.mxu0 0
        %346 = vmatpush1.bf16.msra.mxu0 %v322
        %347 = vmatprep.subr.bf16.mxu0 0
        %348 = vmatpush1.bf16.msra.mxu0 0
        %349 = vmatprep.subr.bf16.mxu0 0
        %350 = vmatpush1.bf16.msra.mxu0 0
        %351 = vmatprep.subr.bf16.mxu0 0
        %352 = vmatpush1.bf16.msra.mxu0 0
        %353 = vmatprep.subr.bf16.mxu0 0
        %354 = vmatpush1.bf16.msra.mxu0 0
        %355 = vmatprep.subr.bf16.mxu0 0
        %356 = vmatpush1.bf16.msra.mxu0 0
        %357 = vmatprep.subr.bf16.mxu0 0
        %358 = vmatpush1.bf16.msra.mxu0 0
        %359 = vmatprep.subr.bf16.mxu0 0
        %360 = vmatpush1.bf16.msra.mxu0 0
        %361 = vmatprep.subr.bf16.mxu0 0
        %362 = vmatpush1.bf16.msra.mxu0 0
        %363 = vmatprep.mubr.bf16.mxu0 0
        %364 = vmatmul.mubr.bf16.gmra.mrb[0].mxu0 %v259
        %v365 = vpop.f32.mrb[0].mxu0
        %v366 = vadd.f32 %v281, %v365
        %v367 = vpop.f32.mrb[0].mxu0
        %v368 = vpop.f32.mrb[0].mxu0
        %v369 = vpop.f32.mrb[0].mxu0
        %370 = vdwg.mxu0
        %v371 = vmul.f32 %v366, 0.5
        %v372 = vmul.f32 %v366, 0.70710677
        %v373 = verf.f32.pop %v372
        %v374 = vadd.f32 %v373, 1.0
        %v375 = vmul.f32 %v371, %v374
        %376 = vadd.xlane.f32.xlu0 %v375
        %v377 = vpop.xlane.xlu0 %376
        %v378 = vrcp.pop 128.0
        %v379 = vmul.f32 %v377, %v378
        %v380 = vsub.f32 %v375, %v379
        %v381 = vmul.f32 %v380, %v380
        %382 = vadd.xlane.f32.xlu0 %v381
        %v383 = vpop.xlane.xlu0 %382
        %v384 = vmul.f32 %v383, %v378
        %v385 = vadd.f32 %v384, 1e-05
        %v386 = vrsqrt.pop %v385
        %v387 = vmul.f32 %v380, %v386
        %v388 = vld [vmem:[#allocation4] sm:$0x1]
        %v390 = vlaneseq
        %v391 = vshrl.u32 %v390, 7
        %v392 = vsub.s32 0, %v391
        %v393 = vrot.slane %v388, %v392
        %v395 = vmul.f32 %v387, %v393
        %v396 = vld [vmem:[#allocation6] sm:$0x1]
        %v398 = vlaneseq
        %v399 = vshrl.u32 %v398, 7
        %v400 = vsub.s32 0, %v399
        %v401 = vrot.slane %v396, %v400
        %v403 = vadd.f32 %v395, %v401
        %v404 = vpack.c.bf16 %v403, %v403
        %405 = vst [vmem:[%s257] sm:$0xf] %v404
        %p406 = scmp.lt.s32.totalorder %s18, 1
        %s407 = scalar_select %p406, %s18, 1
        %s408 = smul.addr %s407, 4
        %s409 = scalar_lea.vmem %s5, %s408
        // Predicated region
        $region53: #{model_forward.2} parent=39 // pred_check
          %p410 = pneg %p146
        $region54: #{model_forward.2} parent=39 // pred_check_branch
          %412 = sbr.rel (%p410) target = $region56
        $region55: #{model_forward.2} parent=39 // pred_region
          _
        $region56: #{model_forward.2} parent=39 // pred_fallthru
          _
      $region40: #{model_forward.2} parent=5 // pred_fallthru
        _
      %p413 = scmp.le.s32.totalorder 2, %s13
      // Predicated region
      $region57: #{model_forward.2} parent=5 // pred_check
        %p414 = pneg %p413
      $region58: #{model_forward.2} parent=5 // pred_check_branch
        %416 = sbr.rel (%p414) target = $region60
      $region59: #{model_forward.2} parent=5 // pred_region
        %s417 = ssub.s32 %s13, 2
        // Predicated region
        $region61: #{model_forward.2} parent=59 // pred_check
          %p418 = pneg %p152
        $region62: #{model_forward.2} parent=59 // pred_check_branch
          %420 = sbr.rel (%p418) target = $region64
        $region63: #{model_forward.2} parent=59 // pred_region
          %p421 = scmp.lt.s32.totalorder %s19, 1
          %s422 = scalar_select %p421, %s19, 1
          %s423 = smul.addr %s422, 4
          %s424 = scalar_lea.vmem %s5, %s423
        $region64: #{model_forward.2} parent=59 // pred_fallthru
          _
      $region60: #{model_forward.2} parent=5 // pred_fallthru
        _
    $region6: #{model_forward.2} parent=1 // loop_footer
      %s17 = sadd.s32 1, %s13
    $region7: #{model_forward.2} parent=1 // loop_footer_branch
      %12 = sbr.rel target = $region3
    $region8: #{model_forward.2} parent=1 // loop_exit
      _
    %425 = vsyncpa [#allocation3], 1
    %s426 = scalar_lea.sflag [#allocation3], 1
    %427 = vsyncpa %s426, 1
    %428 = vsyncpa [#allocation5], 1

</llo_original>
